<compile_context>
chip_gen: v6e
topology: v6e:2x2x1
jax: 0.10.0
libtpu: 0.0.40
codegen_flags: <defaults>
</compile_context>

<pallas_src>
import math
import functools

import jax
import jax.numpy as jnp
from jax import lax
from jax.experimental import pallas as pl
from jax.experimental.pallas import tpu as pltpu


def mha_kernel(x_ref, wqkv_ref, bqkv_ref, wo_ref, bo_ref, out_ref, ctx_ref,
               *, batch, seq, num_heads, head_size, hidden):
    x = x_ref[...]                                                    # (B*S, H)

    # Fused QKV projection: single MXU matmul, f32 accumulation.
    qkv = jnp.dot(x, wqkv_ref[...],
                  preferred_element_type=jnp.float32) + bqkv_ref[...]  # (B*S, 3H)

    scale = 1.0 / math.sqrt(head_size)

    # Per-(batch, head) attention; static unroll over tiny iterations.
    for b in range(batch):
        r0 = b * seq
        for h in range(num_heads):
            c0 = h * head_size
            qh = qkv[r0:r0 + seq, c0:c0 + head_size]                   # (S, d)
            kh = qkv[r0:r0 + seq, hidden + c0:hidden + c0 + head_size]
            vh = qkv[r0:r0 + seq, 2 * hidden + c0:2 * hidden + c0 + head_size]

            # q @ k^T without materializing the transpose (MXU folds it).
            scores = lax.dot_general(
                qh, kh,
                dimension_numbers=(((1,), (1,)), ((), ())),
                preferred_element_type=jnp.float32) * scale            # (S, S)

            # attention_mask=None path; numerically-stable softmax.
            m = jnp.max(scores, axis=-1, keepdims=True)
            p = jnp.exp(scores - m)
            probs = p * pl.reciprocal(jnp.sum(p, axis=-1, keepdims=True),
                                      approx=True)
            # attention_dropout is identity in eval mode.

            # Write this head's context straight into the slab (no concat).
            ctx_ref[pl.ds(r0, seq), pl.ds(c0, head_size)] = jnp.dot(
                probs, vh, preferred_element_type=jnp.float32)

    # Output projection over the full (B*S, H) context slab.
    out = jnp.dot(ctx_ref[...], wo_ref[...],
                  preferred_element_type=jnp.float32) + bo_ref[...]
    out_ref[...] = out.astype(out_ref.dtype)


def multi_head_attention(hidden_states, params, num_heads):
    """hidden_states: (B, S, H) f32.  params: dict of pre-transposed weights/biases."""
    B, S, H = hidden_states.shape
    head_size = H // num_heads
    BS = B * S

    # Fuse Q/K/V weights and biases in the wrapper (one-time, outside kernel).
    w_qkv = jnp.concatenate([params["wq"], params["wk"], params["wv"]], axis=1)  # (H, 3H)
    b_qkv = jnp.concatenate([params["bq"], params["bk"], params["bv"]], axis=1)  # (1, 3H)
    wo, bo = params["wo"], params["bo"]

    x2d = hidden_states.reshape(BS, H)

    kernel = functools.partial(mha_kernel, batch=B, seq=S,
                               num_heads=num_heads, head_size=head_size, hidden=H)

    out2d = pl.pallas_call(
        kernel,
        out_shape=jax.ShapeDtypeStruct((BS, H), hidden_states.dtype),
        grid_spec=pltpu.PrefetchScalarGridSpec(
            num_scalar_prefetch=0,
            grid=(1,),                                       # single grid step, one TC
            in_specs=[
                pl.BlockSpec((BS, H), lambda i: (0, 0)),         # x (batch folded)
                pl.BlockSpec((H, 3 * H), lambda i: (0, 0)),      # fused QKV weight
                pl.BlockSpec((1, 3 * H), lambda i: (0, 0)),      # fused QKV bias
                pl.BlockSpec((H, H), lambda i: (0, 0)),          # output weight
                pl.BlockSpec((1, H), lambda i: (0, 0)),          # output bias
            ],
            out_specs=pl.BlockSpec((BS, H), lambda i: (0, 0)),
            scratch_shapes=[pltpu.VMEM((BS, H), jnp.float32)],   # context slab
        ),
        compiler_params=pltpu.CompilerParams(
            dimension_semantics=("arbitrary",)),
    )(x2d, w_qkv, b_qkv, wo, bo)

    return out2d.reshape(B, S, H)


def reference_mha(x, params, num_heads):
    """Pure-JAX reference mirroring the PyTorch forward (eval mode, mask=None)."""
    B, S, H = x.shape
    d = H // num_heads

    def proj(x, w, b):
        return x @ w + b[0]

    q = proj(x, params["wq"], params["bq"]).reshape(B, S, num_heads, d).transpose(0, 2, 1, 3)
    k = proj(x, params["wk"], params["bk"]).reshape(B, S, num_heads, d).transpose(0, 2, 1, 3)
    v = proj(x, params["wv"], params["bv"]).reshape(B, S, num_heads, d).transpose(0, 2, 1, 3)

    scores = jnp.einsum("bhqd,bhkd->bhqk", q, k) / math.sqrt(d)
    probs = jax.nn.softmax(scores, axis=-1)
    ctx = jnp.einsum("bhqk,bhkd->bhqd", probs, v)
    ctx = ctx.transpose(0, 2, 1, 3).reshape(B, S, H)
    return ctx @ params["wo"] + params["bo"][0]


if __name__ == "__main__":
    # Small shapes consistent with the module: hidden=32, heads=4, batch=2, seq=8
    B, S, H = 2, 8, 32
    num_heads = 4

    key = jax.random.PRNGKey(0)
    kx, kq, kk, kv, ko, kbq, kbk, kbv, kbo = jax.random.split(key, 9)

    x = jax.random.normal(kx, (B, S, H), dtype=jnp.float32)

    # nn.init.normal_(weight, std=0.02); Linear biases default uniform(-1/sqrt(H), 1/sqrt(H)).
    # Weights stored pre-transposed (in_features, out_features) so kernel does x @ W.
    bound = 1.0 / math.sqrt(H)
    params = {
        "wq": 0.02 * jax.random.normal(kq, (H, H), dtype=jnp.float32),
        "wk": 0.02 * jax.random.normal(kk, (H, H), dtype=jnp.float32),
        "wv": 0.02 * jax.random.normal(kv, (H, H), dtype=jnp.float32),
        "wo": 0.02 * jax.random.normal(ko, (H, H), dtype=jnp.float32),
        "bq": jax.random.uniform(kbq, (1, H), jnp.float32, -bound, bound),
        "bk": jax.random.uniform(kbk, (1, H), jnp.float32, -bound, bound),
        "bv": jax.random.uniform(kbv, (1, H), jnp.float32, -bound, bound),
        "bo": jax.random.uniform(kbo, (1, H), jnp.float32, -bound, bound),
    }

    out = multi_head_attention(x, params, num_heads)
    out = jax.block_until_ready(out)

    ref = reference_mha(x, params, num_heads)
    assert out.shape == (B, S, H)
    # Slightly relaxed tolerance: softmax denominator uses the EUP approximate
    # reciprocal (pl.reciprocal(..., approx=True)).
    assert jnp.allclose(out, ref, atol=2e-3, rtol=2e-3), "mismatch vs reference"

    # TODO(synk): attention_dropout (train mode) and output_attentions path not implemented.
    print("KERNEL_OK")
</pallas_src>

<mosaic_0001>
module attributes {stable_mosaic.version = 11 : i64} {
  func.func @mha_kernel(%arg0: i32, %arg1: memref<16x32xf32, #tpu.memory_space<vmem>>, %arg2: memref<32x96xf32, #tpu.memory_space<vmem>>, %arg3: memref<1x96xf32, #tpu.memory_space<vmem>>, %arg4: memref<32x32xf32, #tpu.memory_space<vmem>>, %arg5: memref<1x32xf32, #tpu.memory_space<vmem>>, %arg6: memref<16x32xf32, #tpu.memory_space<vmem>>, %arg7: memref<16x32xf32, #tpu.memory_space<vmem>>) attributes {dimension_semantics = [#tpu.dimension_semantics<arbitrary>], iteration_bounds = array<i64: 1>, scalar_prefetch = 0 : i64, scratch_operands = 1 : i64, tpu.core_type = #tpu.core_type<tc>, window_params = [{pipeline_mode = #tpu.pipeline_mode<synchronous>, transform_indices = @transform_0, window_bounds = array<i64: 16, 32>}, {pipeline_mode = #tpu.pipeline_mode<synchronous>, transform_indices = @transform_1, window_bounds = array<i64: 32, 96>}, {pipeline_mode = #tpu.pipeline_mode<synchronous>, transform_indices = @transform_2, window_bounds = array<i64: 1, 96>}, {pipeline_mode = #tpu.pipeline_mode<synchronous>, transform_indices = @transform_3, window_bounds = array<i64: 32, 32>}, {pipeline_mode = #tpu.pipeline_mode<synchronous>, transform_indices = @transform_4, window_bounds = array<i64: 1, 32>}, {pipeline_mode = #tpu.pipeline_mode<synchronous>, transform_indices = @transform_5, window_bounds = array<i64: 16, 32>}]} {
    %c0 = arith.constant 0 : index
    %c0_0 = arith.constant 0 : index
    %0 = vector.load %arg1[%c0, %c0_0] : memref<16x32xf32, #tpu.memory_space<vmem>>, vector<16x32xf32>
    %c0_1 = arith.constant 0 : index
    %c0_2 = arith.constant 0 : index
    %1 = vector.load %arg2[%c0_1, %c0_2] : memref<32x96xf32, #tpu.memory_space<vmem>>, vector<32x96xf32>
    %cst = arith.constant dense<0.000000e+00> : vector<16x96xf32>
    %2 = tpu.matmul %0, %1, %cst {dimension_numbers = #tpu.dot_dimension_numbers<[1], [0], [0], [1], [0, 0, 1, 1], [], []>} : vector<16x32xf32>, vector<32x96xf32>, vector<16x96xf32> -> vector<16x96xf32>
    %c0_3 = arith.constant 0 : index
    %c0_4 = arith.constant 0 : index
    %3 = vector.load %arg3[%c0_3, %c0_4] : memref<1x96xf32, #tpu.memory_space<vmem>>, vector<1x96xf32>
    %4 = vector.broadcast %3 : vector<1x96xf32> to vector<16x96xf32>
    %5 = arith.addf %2, %4 : vector<16x96xf32>
    %6 = vector.extract_strided_slice %5 {offsets = [0, 0], sizes = [8, 8], strides = [1, 1]} : vector<16x96xf32> to vector<8x8xf32>
    %7 = vector.extract_strided_slice %5 {offsets = [0, 32], sizes = [8, 8], strides = [1, 1]} : vector<16x96xf32> to vector<8x8xf32>
    %8 = vector.extract_strided_slice %5 {offsets = [0, 64], sizes = [8, 8], strides = [1, 1]} : vector<16x96xf32> to vector<8x8xf32>
    %cst_5 = arith.constant dense<0.000000e+00> : vector<8x8xf32>
    %9 = tpu.matmul %6, %7, %cst_5 {dimension_numbers = #tpu.dot_dimension_numbers<[1], [1], [0], [0], [0, 0, 1, 0], [], []>} : vector<8x8xf32>, vector<8x8xf32>, vector<8x8xf32> -> vector<8x8xf32>
    %cst_6 = arith.constant 0.353553385 : f32
    %10 = vector.broadcast %cst_6 : f32 to vector<8x8xf32>
    %11 = arith.mulf %9, %10 : vector<8x8xf32>
    %cst_7 = arith.constant dense<0xFF800000> : vector<8xf32>
    %12 = vector.multi_reduction <maximumf>, %11, %cst_7 [1] : vector<8x8xf32> to vector<8xf32>
    %13 = vector.shape_cast %12 : vector<8xf32> to vector<8x1xf32>
    %14 = vector.broadcast %13 : vector<8x1xf32> to vector<8x8xf32>
    %15 = arith.subf %11, %14 : vector<8x8xf32>
    %16 = math.exp %15 : vector<8x8xf32>
    %cst_8 = arith.constant dense<0.000000e+00> : vector<8xf32>
    %17 = vector.multi_reduction <add>, %16, %cst_8 [1] : vector<8x8xf32> to vector<8xf32>
    %18 = vector.shape_cast %17 : vector<8xf32> to vector<8x1xf32>
    %19 = tpu.reciprocal %18 {approx = true} : vector<8x1xf32> -> vector<8x1xf32>
    %20 = vector.broadcast %19 : vector<8x1xf32> to vector<8x8xf32>
    %21 = arith.mulf %16, %20 : vector<8x8xf32>
    %cst_9 = arith.constant dense<0.000000e+00> : vector<8x8xf32>
    %22 = tpu.matmul %21, %8, %cst_9 {dimension_numbers = #tpu.dot_dimension_numbers<[1], [0], [0], [1], [0, 0, 1, 1], [], []>} : vector<8x8xf32>, vector<8x8xf32>, vector<8x8xf32> -> vector<8x8xf32>
    %c0_10 = arith.constant 0 : index
    %c0_11 = arith.constant 0 : index
    %23 = vector.load %arg7[%c0_10, %c0_11] : memref<16x32xf32, #tpu.memory_space<vmem>>, vector<8x8xf32>
    tpu.vector_store %arg7[%c0_10, %c0_11], %22 {strides = array<i32>} : memref<16x32xf32, #tpu.memory_space<vmem>>, vector<8x8xf32>,
    %24 = vector.extract_strided_slice %5 {offsets = [0, 8], sizes = [8, 8], strides = [1, 1]} : vector<16x96xf32> to vector<8x8xf32>
    %25 = vector.extract_strided_slice %5 {offsets = [0, 40], sizes = [8, 8], strides = [1, 1]} : vector<16x96xf32> to vector<8x8xf32>
    %26 = vector.extract_strided_slice %5 {offsets = [0, 72], sizes = [8, 8], strides = [1, 1]} : vector<16x96xf32> to vector<8x8xf32>
    %cst_12 = arith.constant dense<0.000000e+00> : vector<8x8xf32>
    %27 = tpu.matmul %24, %25, %cst_12 {dimension_numbers = #tpu.dot_dimension_numbers<[1], [1], [0], [0], [0, 0, 1, 0], [], []>} : vector<8x8xf32>, vector<8x8xf32>, vector<8x8xf32> -> vector<8x8xf32>
    %cst_13 = arith.constant 0.353553385 : f32
    %28 = vector.broadcast %cst_13 : f32 to vector<8x8xf32>
    %29 = arith.mulf %27, %28 : vector<8x8xf32>
    %cst_14 = arith.constant dense<0xFF800000> : vector<8xf32>
    %30 = vector.multi_reduction <maximumf>, %29, %cst_14 [1] : vector<8x8xf32> to vector<8xf32>
    %31 = vector.shape_cast %30 : vector<8xf32> to vector<8x1xf32>
    %32 = vector.broadcast %31 : vector<8x1xf32> to vector<8x8xf32>
    %33 = arith.subf %29, %32 : vector<8x8xf32>
    %34 = math.exp %33 : vector<8x8xf32>
    %cst_15 = arith.constant dense<0.000000e+00> : vector<8xf32>
    %35 = vector.multi_reduction <add>, %34, %cst_15 [1] : vector<8x8xf32> to vector<8xf32>
    %36 = vector.shape_cast %35 : vector<8xf32> to vector<8x1xf32>
    %37 = tpu.reciprocal %36 {approx = true} : vector<8x1xf32> -> vector<8x1xf32>
    %38 = vector.broadcast %37 : vector<8x1xf32> to vector<8x8xf32>
    %39 = arith.mulf %34, %38 : vector<8x8xf32>
    %cst_16 = arith.constant dense<0.000000e+00> : vector<8x8xf32>
    %40 = tpu.matmul %39, %26, %cst_16 {dimension_numbers = #tpu.dot_dimension_numbers<[1], [0], [0], [1], [0, 0, 1, 1], [], []>} : vector<8x8xf32>, vector<8x8xf32>, vector<8x8xf32> -> vector<8x8xf32>
    %c0_17 = arith.constant 0 : index
    %c8 = arith.constant 8 : index
    %41 = vector.load %arg7[%c0_17, %c8] : memref<16x32xf32, #tpu.memory_space<vmem>>, vector<8x8xf32>
    tpu.vector_store %arg7[%c0_17, %c8], %40 {strides = array<i32>} : memref<16x32xf32, #tpu.memory_space<vmem>>, vector<8x8xf32>,
    %42 = vector.extract_strided_slice %5 {offsets = [0, 16], sizes = [8, 8], strides = [1, 1]} : vector<16x96xf32> to vector<8x8xf32>
    %43 = vector.extract_strided_slice %5 {offsets = [0, 48], sizes = [8, 8], strides = [1, 1]} : vector<16x96xf32> to vector<8x8xf32>
    %44 = vector.extract_strided_slice %5 {offsets = [0, 80], sizes = [8, 8], strides = [1, 1]} : vector<16x96xf32> to vector<8x8xf32>
    %cst_18 = arith.constant dense<0.000000e+00> : vector<8x8xf32>
    %45 = tpu.matmul %42, %43, %cst_18 {dimension_numbers = #tpu.dot_dimension_numbers<[1], [1], [0], [0], [0, 0, 1, 0], [], []>} : vector<8x8xf32>, vector<8x8xf32>, vector<8x8xf32> -> vector<8x8xf32>
    %cst_19 = arith.constant 0.353553385 : f32
    %46 = vector.broadcast %cst_19 : f32 to vector<8x8xf32>
    %47 = arith.mulf %45, %46 : vector<8x8xf32>
    %cst_20 = arith.constant dense<0xFF800000> : vector<8xf32>
    %48 = vector.multi_reduction <maximumf>, %47, %cst_20 [1] : vector<8x8xf32> to vector<8xf32>
    %49 = vector.shape_cast %48 : vector<8xf32> to vector<8x1xf32>
    %50 = vector.broadcast %49 : vector<8x1xf32> to vector<8x8xf32>
    %51 = arith.subf %47, %50 : vector<8x8xf32>
    %52 = math.exp %51 : vector<8x8xf32>
    %cst_21 = arith.constant dense<0.000000e+00> : vector<8xf32>
    %53 = vector.multi_reduction <add>, %52, %cst_21 [1] : vector<8x8xf32> to vector<8xf32>
    %54 = vector.shape_cast %53 : vector<8xf32> to vector<8x1xf32>
    %55 = tpu.reciprocal %54 {approx = true} : vector<8x1xf32> -> vector<8x1xf32>
    %56 = vector.broadcast %55 : vector<8x1xf32> to vector<8x8xf32>
    %57 = arith.mulf %52, %56 : vector<8x8xf32>
    %cst_22 = arith.constant dense<0.000000e+00> : vector<8x8xf32>
    %58 = tpu.matmul %57, %44, %cst_22 {dimension_numbers = #tpu.dot_dimension_numbers<[1], [0], [0], [1], [0, 0, 1, 1], [], []>} : vector<8x8xf32>, vector<8x8xf32>, vector<8x8xf32> -> vector<8x8xf32>
    %c0_23 = arith.constant 0 : index
    %c16 = arith.constant 16 : index
    %59 = vector.load %arg7[%c0_23, %c16] : memref<16x32xf32, #tpu.memory_space<vmem>>, vector<8x8xf32>
    tpu.vector_store %arg7[%c0_23, %c16], %58 {strides = array<i32>} : memref<16x32xf32, #tpu.memory_space<vmem>>, vector<8x8xf32>,
    %60 = vector.extract_strided_slice %5 {offsets = [0, 24], sizes = [8, 8], strides = [1, 1]} : vector<16x96xf32> to vector<8x8xf32>
    %61 = vector.extract_strided_slice %5 {offsets = [0, 56], sizes = [8, 8], strides = [1, 1]} : vector<16x96xf32> to vector<8x8xf32>
    %62 = vector.extract_strided_slice %5 {offsets = [0, 88], sizes = [8, 8], strides = [1, 1]} : vector<16x96xf32> to vector<8x8xf32>
    %cst_24 = arith.constant dense<0.000000e+00> : vector<8x8xf32>
    %63 = tpu.matmul %60, %61, %cst_24 {dimension_numbers = #tpu.dot_dimension_numbers<[1], [1], [0], [0], [0, 0, 1, 0], [], []>} : vector<8x8xf32>, vector<8x8xf32>, vector<8x8xf32> -> vector<8x8xf32>
    %cst_25 = arith.constant 0.353553385 : f32
    %64 = vector.broadcast %cst_25 : f32 to vector<8x8xf32>
    %65 = arith.mulf %63, %64 : vector<8x8xf32>
    %cst_26 = arith.constant dense<0xFF800000> : vector<8xf32>
    %66 = vector.multi_reduction <maximumf>, %65, %cst_26 [1] : vector<8x8xf32> to vector<8xf32>
    %67 = vector.shape_cast %66 : vector<8xf32> to vector<8x1xf32>
    %68 = vector.broadcast %67 : vector<8x1xf32> to vector<8x8xf32>
    %69 = arith.subf %65, %68 : vector<8x8xf32>
    %70 = math.exp %69 : vector<8x8xf32>
    %cst_27 = arith.constant dense<0.000000e+00> : vector<8xf32>
    %71 = vector.multi_reduction <add>, %70, %cst_27 [1] : vector<8x8xf32> to vector<8xf32>
    %72 = vector.shape_cast %71 : vector<8xf32> to vector<8x1xf32>
    %73 = tpu.reciprocal %72 {approx = true} : vector<8x1xf32> -> vector<8x1xf32>
    %74 = vector.broadcast %73 : vector<8x1xf32> to vector<8x8xf32>
    %75 = arith.mulf %70, %74 : vector<8x8xf32>
    %cst_28 = arith.constant dense<0.000000e+00> : vector<8x8xf32>
    %76 = tpu.matmul %75, %62, %cst_28 {dimension_numbers = #tpu.dot_dimension_numbers<[1], [0], [0], [1], [0, 0, 1, 1], [], []>} : vector<8x8xf32>, vector<8x8xf32>, vector<8x8xf32> -> vector<8x8xf32>
    %c0_29 = arith.constant 0 : index
    %c24 = arith.constant 24 : index
    %77 = vector.load %arg7[%c0_29, %c24] : memref<16x32xf32, #tpu.memory_space<vmem>>, vector<8x8xf32>
    tpu.vector_store %arg7[%c0_29, %c24], %76 {strides = array<i32>} : memref<16x32xf32, #tpu.memory_space<vmem>>, vector<8x8xf32>,
    %78 = vector.extract_strided_slice %5 {offsets = [8, 0], sizes = [8, 8], strides = [1, 1]} : vector<16x96xf32> to vector<8x8xf32>
    %79 = vector.extract_strided_slice %5 {offsets = [8, 32], sizes = [8, 8], strides = [1, 1]} : vector<16x96xf32> to vector<8x8xf32>
    %80 = vector.extract_strided_slice %5 {offsets = [8, 64], sizes = [8, 8], strides = [1, 1]} : vector<16x96xf32> to vector<8x8xf32>
    %cst_30 = arith.constant dense<0.000000e+00> : vector<8x8xf32>
    %81 = tpu.matmul %78, %79, %cst_30 {dimension_numbers = #tpu.dot_dimension_numbers<[1], [1], [0], [0], [0, 0, 1, 0], [], []>} : vector<8x8xf32>, vector<8x8xf32>, vector<8x8xf32> -> vector<8x8xf32>
    %cst_31 = arith.constant 0.353553385 : f32
    %82 = vector.broadcast %cst_31 : f32 to vector<8x8xf32>
    %83 = arith.mulf %81, %82 : vector<8x8xf32>
    %cst_32 = arith.constant dense<0xFF800000> : vector<8xf32>
    %84 = vector.multi_reduction <maximumf>, %83, %cst_32 [1] : vector<8x8xf32> to vector<8xf32>
    %85 = vector.shape_cast %84 : vector<8xf32> to vector<8x1xf32>
    %86 = vector.broadcast %85 : vector<8x1xf32> to vector<8x8xf32>
    %87 = arith.subf %83, %86 : vector<8x8xf32>
    %88 = math.exp %87 : vector<8x8xf32>
    %cst_33 = arith.constant dense<0.000000e+00> : vector<8xf32>
    %89 = vector.multi_reduction <add>, %88, %cst_33 [1] : vector<8x8xf32> to vector<8xf32>
    %90 = vector.shape_cast %89 : vector<8xf32> to vector<8x1xf32>
    %91 = tpu.reciprocal %90 {approx = true} : vector<8x1xf32> -> vector<8x1xf32>
    %92 = vector.broadcast %91 : vector<8x1xf32> to vector<8x8xf32>
    %93 = arith.mulf %88, %92 : vector<8x8xf32>
    %cst_34 = arith.constant dense<0.000000e+00> : vector<8x8xf32>
    %94 = tpu.matmul %93, %80, %cst_34 {dimension_numbers = #tpu.dot_dimension_numbers<[1], [0], [0], [1], [0, 0, 1, 1], [], []>} : vector<8x8xf32>, vector<8x8xf32>, vector<8x8xf32> -> vector<8x8xf32>
    %c8_35 = arith.constant 8 : index
    %c0_36 = arith.constant 0 : index
    %95 = vector.load %arg7[%c8_35, %c0_36] : memref<16x32xf32, #tpu.memory_space<vmem>>, vector<8x8xf32>
    tpu.vector_store %arg7[%c8_35, %c0_36], %94 {strides = array<i32>} : memref<16x32xf32, #tpu.memory_space<vmem>>, vector<8x8xf32>,
    %96 = vector.extract_strided_slice %5 {offsets = [8, 8], sizes = [8, 8], strides = [1, 1]} : vector<16x96xf32> to vector<8x8xf32>
    %97 = vector.extract_strided_slice %5 {offsets = [8, 40], sizes = [8, 8], strides = [1, 1]} : vector<16x96xf32> to vector<8x8xf32>
    %98 = vector.extract_strided_slice %5 {offsets = [8, 72], sizes = [8, 8], strides = [1, 1]} : vector<16x96xf32> to vector<8x8xf32>
    %cst_37 = arith.constant dense<0.000000e+00> : vector<8x8xf32>
    %99 = tpu.matmul %96, %97, %cst_37 {dimension_numbers = #tpu.dot_dimension_numbers<[1], [1], [0], [0], [0, 0, 1, 0], [], []>} : vector<8x8xf32>, vector<8x8xf32>, vector<8x8xf32> -> vector<8x8xf32>
    %cst_38 = arith.constant 0.353553385 : f32
    %100 = vector.broadcast %cst_38 : f32 to vector<8x8xf32>
    %101 = arith.mulf %99, %100 : vector<8x8xf32>
    %cst_39 = arith.constant dense<0xFF800000> : vector<8xf32>
    %102 = vector.multi_reduction <maximumf>, %101, %cst_39 [1] : vector<8x8xf32> to vector<8xf32>
    %103 = vector.shape_cast %102 : vector<8xf32> to vector<8x1xf32>
    %104 = vector.broadcast %103 : vector<8x1xf32> to vector<8x8xf32>
    %105 = arith.subf %101, %104 : vector<8x8xf32>
    %106 = math.exp %105 : vector<8x8xf32>
    %cst_40 = arith.constant dense<0.000000e+00> : vector<8xf32>
    %107 = vector.multi_reduction <add>, %106, %cst_40 [1] : vector<8x8xf32> to vector<8xf32>
    %108 = vector.shape_cast %107 : vector<8xf32> to vector<8x1xf32>
    %109 = tpu.reciprocal %108 {approx = true} : vector<8x1xf32> -> vector<8x1xf32>
    %110 = vector.broadcast %109 : vector<8x1xf32> to vector<8x8xf32>
    %111 = arith.mulf %106, %110 : vector<8x8xf32>
    %cst_41 = arith.constant dense<0.000000e+00> : vector<8x8xf32>
    %112 = tpu.matmul %111, %98, %cst_41 {dimension_numbers = #tpu.dot_dimension_numbers<[1], [0], [0], [1], [0, 0, 1, 1], [], []>} : vector<8x8xf32>, vector<8x8xf32>, vector<8x8xf32> -> vector<8x8xf32>
    %c8_42 = arith.constant 8 : index
    %c8_43 = arith.constant 8 : index
    %113 = vector.load %arg7[%c8_42, %c8_43] : memref<16x32xf32, #tpu.memory_space<vmem>>, vector<8x8xf32>
    tpu.vector_store %arg7[%c8_42, %c8_43], %112 {strides = array<i32>} : memref<16x32xf32, #tpu.memory_space<vmem>>, vector<8x8xf32>,
    %114 = vector.extract_strided_slice %5 {offsets = [8, 16], sizes = [8, 8], strides = [1, 1]} : vector<16x96xf32> to vector<8x8xf32>
    %115 = vector.extract_strided_slice %5 {offsets = [8, 48], sizes = [8, 8], strides = [1, 1]} : vector<16x96xf32> to vector<8x8xf32>
    %116 = vector.extract_strided_slice %5 {offsets = [8, 80], sizes = [8, 8], strides = [1, 1]} : vector<16x96xf32> to vector<8x8xf32>
    %cst_44 = arith.constant dense<0.000000e+00> : vector<8x8xf32>
    %117 = tpu.matmul %114, %115, %cst_44 {dimension_numbers = #tpu.dot_dimension_numbers<[1], [1], [0], [0], [0, 0, 1, 0], [], []>} : vector<8x8xf32>, vector<8x8xf32>, vector<8x8xf32> -> vector<8x8xf32>
    %cst_45 = arith.constant 0.353553385 : f32
    %118 = vector.broadcast %cst_45 : f32 to vector<8x8xf32>
    %119 = arith.mulf %117, %118 : vector<8x8xf32>
    %cst_46 = arith.constant dense<0xFF800000> : vector<8xf32>
    %120 = vector.multi_reduction <maximumf>, %119, %cst_46 [1] : vector<8x8xf32> to vector<8xf32>
    %121 = vector.shape_cast %120 : vector<8xf32> to vector<8x1xf32>
    %122 = vector.broadcast %121 : vector<8x1xf32> to vector<8x8xf32>
    %123 = arith.subf %119, %122 : vector<8x8xf32>
    %124 = math.exp %123 : vector<8x8xf32>
    %cst_47 = arith.constant dense<0.000000e+00> : vector<8xf32>
    %125 = vector.multi_reduction <add>, %124, %cst_47 [1] : vector<8x8xf32> to vector<8xf32>
    %126 = vector.shape_cast %125 : vector<8xf32> to vector<8x1xf32>
    %127 = tpu.reciprocal %126 {approx = true} : vector<8x1xf32> -> vector<8x1xf32>
    %128 = vector.broadcast %127 : vector<8x1xf32> to vector<8x8xf32>
    %129 = arith.mulf %124, %128 : vector<8x8xf32>
    %cst_48 = arith.constant dense<0.000000e+00> : vector<8x8xf32>
    %130 = tpu.matmul %129, %116, %cst_48 {dimension_numbers = #tpu.dot_dimension_numbers<[1], [0], [0], [1], [0, 0, 1, 1], [], []>} : vector<8x8xf32>, vector<8x8xf32>, vector<8x8xf32> -> vector<8x8xf32>
    %c8_49 = arith.constant 8 : index
    %c16_50 = arith.constant 16 : index
    %131 = vector.load %arg7[%c8_49, %c16_50] : memref<16x32xf32, #tpu.memory_space<vmem>>, vector<8x8xf32>
    tpu.vector_store %arg7[%c8_49, %c16_50], %130 {strides = array<i32>} : memref<16x32xf32, #tpu.memory_space<vmem>>, vector<8x8xf32>,
    %132 = vector.extract_strided_slice %5 {offsets = [8, 24], sizes = [8, 8], strides = [1, 1]} : vector<16x96xf32> to vector<8x8xf32>
    %133 = vector.extract_strided_slice %5 {offsets = [8, 56], sizes = [8, 8], strides = [1, 1]} : vector<16x96xf32> to vector<8x8xf32>
    %134 = vector.extract_strided_slice %5 {offsets = [8, 88], sizes = [8, 8], strides = [1, 1]} : vector<16x96xf32> to vector<8x8xf32>
    %cst_51 = arith.constant dense<0.000000e+00> : vector<8x8xf32>
    %135 = tpu.matmul %132, %133, %cst_51 {dimension_numbers = #tpu.dot_dimension_numbers<[1], [1], [0], [0], [0, 0, 1, 0], [], []>} : vector<8x8xf32>, vector<8x8xf32>, vector<8x8xf32> -> vector<8x8xf32>
    %cst_52 = arith.constant 0.353553385 : f32
    %136 = vector.broadcast %cst_52 : f32 to vector<8x8xf32>
    %137 = arith.mulf %135, %136 : vector<8x8xf32>
    %cst_53 = arith.constant dense<0xFF800000> : vector<8xf32>
    %138 = vector.multi_reduction <maximumf>, %137, %cst_53 [1] : vector<8x8xf32> to vector<8xf32>
    %139 = vector.shape_cast %138 : vector<8xf32> to vector<8x1xf32>
    %140 = vector.broadcast %139 : vector<8x1xf32> to vector<8x8xf32>
    %141 = arith.subf %137, %140 : vector<8x8xf32>
    %142 = math.exp %141 : vector<8x8xf32>
    %cst_54 = arith.constant dense<0.000000e+00> : vector<8xf32>
    %143 = vector.multi_reduction <add>, %142, %cst_54 [1] : vector<8x8xf32> to vector<8xf32>
    %144 = vector.shape_cast %143 : vector<8xf32> to vector<8x1xf32>
    %145 = tpu.reciprocal %144 {approx = true} : vector<8x1xf32> -> vector<8x1xf32>
    %146 = vector.broadcast %145 : vector<8x1xf32> to vector<8x8xf32>
    %147 = arith.mulf %142, %146 : vector<8x8xf32>
    %cst_55 = arith.constant dense<0.000000e+00> : vector<8x8xf32>
    %148 = tpu.matmul %147, %134, %cst_55 {dimension_numbers = #tpu.dot_dimension_numbers<[1], [0], [0], [1], [0, 0, 1, 1], [], []>} : vector<8x8xf32>, vector<8x8xf32>, vector<8x8xf32> -> vector<8x8xf32>
    %c8_56 = arith.constant 8 : index
    %c24_57 = arith.constant 24 : index
    %149 = vector.load %arg7[%c8_56, %c24_57] : memref<16x32xf32, #tpu.memory_space<vmem>>, vector<8x8xf32>
    tpu.vector_store %arg7[%c8_56, %c24_57], %148 {strides = array<i32>} : memref<16x32xf32, #tpu.memory_space<vmem>>, vector<8x8xf32>,
    %c0_58 = arith.constant 0 : index
    %c0_59 = arith.constant 0 : index
    %150 = vector.load %arg7[%c0_58, %c0_59] : memref<16x32xf32, #tpu.memory_space<vmem>>, vector<16x32xf32>
    %c0_60 = arith.constant 0 : index
    %c0_61 = arith.constant 0 : index
    %151 = vector.load %arg4[%c0_60, %c0_61] : memref<32x32xf32, #tpu.memory_space<vmem>>, vector<32x32xf32>
    %cst_62 = arith.constant dense<0.000000e+00> : vector<16x32xf32>
    %152 = tpu.matmul %150, %151, %cst_62 {dimension_numbers = #tpu.dot_dimension_numbers<[1], [0], [0], [1], [0, 0, 1, 1], [], []>} : vector<16x32xf32>, vector<32x32xf32>, vector<16x32xf32> -> vector<16x32xf32>
    %c0_63 = arith.constant 0 : index
    %c0_64 = arith.constant 0 : index
    %153 = vector.load %arg5[%c0_63, %c0_64] : memref<1x32xf32, #tpu.memory_space<vmem>>, vector<1x32xf32>
    %154 = vector.broadcast %153 : vector<1x32xf32> to vector<16x32xf32>
    %155 = arith.addf %152, %154 : vector<16x32xf32>
    %c0_65 = arith.constant 0 : index
    %c0_66 = arith.constant 0 : index
    %156 = vector.load %arg6[%c0_65, %c0_66] : memref<16x32xf32, #tpu.memory_space<vmem>>, vector<16x32xf32>
    tpu.vector_store %arg6[%c0_65, %c0_66], %155 {strides = array<i32>} : memref<16x32xf32, #tpu.memory_space<vmem>>, vector<16x32xf32>,
    return
  }
  func.func @transform_0(%arg0: i32) -> (i32, i32) {
    %c0_i32 = arith.constant 0 : i32
    %c0_i32_0 = arith.constant 0 : i32
    %c0_i32_1 = arith.constant 0 : i32
    return %c0_i32, %c0_i32_0 : i32, i32
  }
  func.func @transform_1(%arg0: i32) -> (i32, i32) {
    %c0_i32 = arith.constant 0 : i32
    %c0_i32_0 = arith.constant 0 : i32
    %c0_i32_1 = arith.constant 0 : i32
    return %c0_i32, %c0_i32_0 : i32, i32
  }
  func.func @transform_2(%arg0: i32) -> (i32, i32) {
    %c0_i32 = arith.constant 0 : i32
    %c0_i32_0 = arith.constant 0 : i32
    %c0_i32_1 = arith.constant 0 : i32
    return %c0_i32, %c0_i32_0 : i32, i32
  }
  func.func @transform_3(%arg0: i32) -> (i32, i32) {
    %c0_i32 = arith.constant 0 : i32
    %c0_i32_0 = arith.constant 0 : i32
    %c0_i32_1 = arith.constant 0 : i32
    return %c0_i32, %c0_i32_0 : i32, i32
  }
  func.func @transform_4(%arg0: i32) -> (i32, i32) {
    %c0_i32 = arith.constant 0 : i32
    %c0_i32_0 = arith.constant 0 : i32
    %c0_i32_1 = arith.constant 0 : i32
    return %c0_i32, %c0_i32_0 : i32, i32
  }
  func.func @transform_5(%arg0: i32) -> (i32, i32) {
    %c0_i32 = arith.constant 0 : i32
    %c0_i32_0 = arith.constant 0 : i32
    %c0_i32_1 = arith.constant 0 : i32
    return %c0_i32, %c0_i32_0 : i32, i32
  }
}

</mosaic_0001>

<llo_original>
// kernel: tpu_custom_call.1
$region0: #{tpu_custom_call.1}
  #allocation0 [shape = 'u32[]', space=smem, size = 0x4, offset = 0x4, fixed_abs, tag = 'smem constant byte address 0x4 - core index']
  #allocation1 [shape = 'u32[144,128]{1,0:T(1,128)}', space=vmem, size = 0x12000, scoped, tag = 'internal scratch']
  #allocation2 [shape = 'f32[16,32]{1,0:T(8,128)}', space=vmem, size = 0x2000, scoped, tag = 'scratch operand']
  %s0 = inlined_call_operand.hbm [shape: f32[16,32], index: 0, kind: input, shape index: {}]
  %s1 = inlined_call_operand.hbm [shape: f32[32,96], index: 1, kind: input, shape index: {}]
  %s2 = inlined_call_operand.vmem [shape: f32[1,96], index: 2, kind: input, shape index: {}]
  %s3 = inlined_call_operand.hbm [shape: f32[32,32], index: 3, kind: input, shape index: {}]
  %s4 = inlined_call_operand.vmem [shape: f32[1,32], index: 4, kind: input, shape index: {}]
  %s5 = inlined_call_operand.hbm [shape: f32[16,32], index: 5, kind: output, shape index: {}]
  %s6 = sld [smem:[#allocation0]]
  $region42: #{tpu_custom_call.1} parent=0
    _
  %s8 = ssub.s32 1, %s6
  %s9 = scalar_select 0, %s8, %s6
  $region1: #{tpu_custom_call.1} parent=0
    #allocation3 [shape = 'u8[8192]{0}', space=vmem, size = 0x2000, scoped, tag = 'input window, operand 0, single buffered']
    #allocation4 [shape = 's32[1]{0}', space=sflag, size = 0x4, scoped, tag = 'scoped memory for tpu_custom_call.1']
    #allocation5 [shape = 's32[1]{0}', space=sflag, size = 0x4, scoped, tag = 'scoped memory for tpu_custom_call.1']
    #allocation6 [shape = 'u8[16384]{0}', space=vmem, size = 0x4000, scoped, tag = 'input window, operand 1, single buffered']
    #allocation7 [shape = 's32[1]{0}', space=sflag, size = 0x4, scoped, tag = 'scoped memory for tpu_custom_call.1']
    #allocation8 [shape = 'u8[16384]{0}', space=vmem, size = 0x4000, scoped, tag = 'input window, operand 3, single buffered']
    #allocation9 [shape = 'u8[8192]{0}', space=vmem, size = 0x2000, scoped, tag = 'output window, operand 0, single buffered']
    %10 = vsyncpa [#allocation4], 0
    %11 = vsyncpa [#allocation7], 0
    %12 = vsyncpa [#allocation5], 0
    // Predicated region
    $region2: #{tpu_custom_call.1} parent=1 // pred_check
      _
    $region3: #{tpu_custom_call.1} parent=1 // pred_check_branch
      %14 = sbr.rel (0) target = $region5
    $region4: #{tpu_custom_call.1} parent=1 // pred_region
      %s16 = ssub.s32 256, 256
      %17 = vsyncadd [#allocation4], %s16
      %s18 = sshll.u32 [#allocation3], 4
      %s19 = int_to_ptr.vmem [resolvable:$true] %s18
      %24 = dma.hbm_to_vmem [thread:$0]  %s0, 256, %s19, [#allocation4], 128, 128, 8
    $region5: #{tpu_custom_call.1} parent=1 // pred_fallthru
      _
    // Predicated region
    $region6: #{tpu_custom_call.1} parent=1 // pred_check
      _
    $region7: #{tpu_custom_call.1} parent=1 // pred_check_branch
      %26 = sbr.rel (0) target = $region9
    $region8: #{tpu_custom_call.1} parent=1 // pred_region
      %s28 = ssub.s32 512, 512
      %29 = vsyncadd [#allocation7], %s28
      %s30 = sshll.u32 [#allocation6], 4
      %s31 = int_to_ptr.vmem [resolvable:$true] %s30
      %36 = dma.hbm_to_vmem [thread:$0]  %s1, 512, %s31, [#allocation7], 128, 128, 8
    $region9: #{tpu_custom_call.1} parent=1 // pred_fallthru
      _
    // Predicated region
    $region10: #{tpu_custom_call.1} parent=1 // pred_check
      _
    $region11: #{tpu_custom_call.1} parent=1 // pred_check_branch
      %38 = sbr.rel (0) target = $region13
    $region12: #{tpu_custom_call.1} parent=1 // pred_region
      _
    $region13: #{tpu_custom_call.1} parent=1 // pred_fallthru
      _
    // Predicated region
    $region14: #{tpu_custom_call.1} parent=1 // pred_check
      _
    $region15: #{tpu_custom_call.1} parent=1 // pred_check_branch
      %40 = sbr.rel (0) target = $region17
    $region16: #{tpu_custom_call.1} parent=1 // pred_region
      %s42 = ssub.s32 512, 512
      %43 = vsyncadd [#allocation7], %s42
      %s44 = sshll.u32 [#allocation8], 4
      %s45 = int_to_ptr.vmem [resolvable:$true] %s44
      %50 = dma.hbm_to_vmem [thread:$0]  %s3, 512, %s45, [#allocation7], 128, 128, 8
    $region17: #{tpu_custom_call.1} parent=1 // pred_fallthru
      _
    // Predicated region
    $region18: #{tpu_custom_call.1} parent=1 // pred_check
      _
    $region19: #{tpu_custom_call.1} parent=1 // pred_check_branch
      %52 = sbr.rel (0) target = $region21
    $region20: #{tpu_custom_call.1} parent=1 // pred_region
      _
    $region21: #{tpu_custom_call.1} parent=1 // pred_fallthru
      _
    // Predicated region
    $region22: #{tpu_custom_call.1} parent=1 // pred_check
      _
    $region23: #{tpu_custom_call.1} parent=1 // pred_check_branch
      %54 = sbr.rel (0) target = $region25
    $region24: #{tpu_custom_call.1} parent=1 // pred_region
      %55 = dma.done [#allocation4], 256
    $region25: #{tpu_custom_call.1} parent=1 // pred_fallthru
      _
    // Predicated region
    $region26: #{tpu_custom_call.1} parent=1 // pred_check
      _
    $region27: #{tpu_custom_call.1} parent=1 // pred_check_branch
      %57 = sbr.rel (0) target = $region29
    $region28: #{tpu_custom_call.1} parent=1 // pred_region
      %58 = dma.done [#allocation7], 512
    $region29: #{tpu_custom_call.1} parent=1 // pred_fallthru
      _
    // Predicated region
    $region30: #{tpu_custom_call.1} parent=1 // pred_check
      _
    $region31: #{tpu_custom_call.1} parent=1 // pred_check_branch
      %60 = sbr.rel (0) target = $region33
    $region32: #{tpu_custom_call.1} parent=1 // pred_region
      %61 = dma.done [#allocation7], 512
    $region33: #{tpu_custom_call.1} parent=1 // pred_fallthru
      _
    %v62 = vld [vmem:[#allocation3] sm:$0xff]
    %v63 = vld [vmem:[#allocation3 + $0x8] sm:$0xff]
    %v64 = vld [vmem:[#allocation6] sm:$0xff]
    %v65 = vld [vmem:[#allocation6 + $0x8] sm:$0xff]
    %v66 = vld [vmem:[#allocation6 + $0x10] sm:$0xff]
    %v67 = vld [vmem:[#allocation6 + $0x18] sm:$0xff]
    %v68 = vld [vmem:[%s2] sm:$0x1]
    %v70 = vlaneseq
    %v71 = vshrl.u32 %v70, 7
    %v72 = vsub.s32 0, %v71
    %v73 = vrot.slane %v68, %v72
    %vm75 = vcmask 261120
    %v77 = vsel %vm75, %v62, 0
    %v80 = vsel %vm75, %v63, 0
    %82 = vmatprep.subr.mxu0 0.0
    %83 = vmatpush1.msra.mxu0 0.0
    %84 = vmatprep.subr.mxu0 0.0
    %85 = vmatpush1.msra.mxu0 0.0
    %86 = vmatprep.subr.mxu0 0.0
    %87 = vmatpush1.msra.mxu0 0.0
    %88 = vmatprep.subr.mxu0 0.0
    %89 = vmatpush1.msra.mxu0 0.0
    %90 = vmatprep.subr.mxu0 0.0
    %91 = vmatpush1.msra.mxu0 0.0
    %92 = vmatprep.subr.mxu0 0.0
    %93 = vmatpush1.msra.mxu0 0.0
    %94 = vmatprep.subr.mxu0 0.0
    %95 = vmatpush1.msra.mxu0 0.0
    %96 = vmatprep.subr.mxu0 0.0
    %97 = vmatpush1.msra.mxu0 0.0
    %98 = vmatprep.subr.mxu0 0.0
    %99 = vmatpush1.msra.mxu0 0.0
    %100 = vmatprep.subr.mxu0 0.0
    %101 = vmatpush1.msra.mxu0 0.0
    %102 = vmatprep.subr.mxu0 0.0
    %103 = vmatpush1.msra.mxu0 0.0
    %104 = vmatprep.subr.mxu0 0.0
    %105 = vmatpush1.msra.mxu0 0.0
    %106 = vmatprep.subr.mxu0 0.0
    %107 = vmatpush1.msra.mxu0 %v67
    %108 = vmatprep.subr.mxu0 0.0
    %109 = vmatpush1.msra.mxu0 %v66
    %110 = vmatprep.subr.mxu0 0.0
    %111 = vmatpush1.msra.mxu0 %v65
    %112 = vmatprep.subr.mxu0 0.0
    %113 = vmatpush1.msra.mxu0 %v64
    %114 = vmatprep.subr.mxu0 0.0
    %115 = vmatpush2.msra.mxu0 0.0
    %116 = vmatprep.subr.mxu0 0.0
    %117 = vmatpush2.msra.mxu0 0.0
    %118 = vmatprep.subr.mxu0 0.0
    %119 = vmatpush2.msra.mxu0 0.0
    %120 = vmatprep.subr.mxu0 0.0
    %121 = vmatpush2.msra.mxu0 0.0
    %122 = vmatprep.subr.mxu0 0.0
    %123 = vmatpush2.msra.mxu0 0.0
    %124 = vmatprep.subr.mxu0 0.0
    %125 = vmatpush2.msra.mxu0 0.0
    %126 = vmatprep.subr.mxu0 0.0
    %127 = vmatpush2.msra.mxu0 0.0
    %128 = vmatprep.subr.mxu0 0.0
    %129 = vmatpush2.msra.mxu0 0.0
    %130 = vmatprep.subr.mxu0 0.0
    %131 = vmatpush2.msra.mxu0 0.0
    %132 = vmatprep.subr.mxu0 0.0
    %133 = vmatpush2.msra.mxu0 0.0
    %134 = vmatprep.subr.mxu0 0.0
    %135 = vmatpush2.msra.mxu0 0.0
    %136 = vmatprep.subr.mxu0 0.0
    %137 = vmatpush2.msra.mxu0 0.0
    %138 = vmatprep.subr.mxu0 0.0
    %139 = vmatpush2.msra.mxu0 0.0
    %140 = vmatprep.subr.mxu0 0.0
    %141 = vmatpush2.msra.mxu0 0.0
    %142 = vmatprep.subr.mxu0 0.0
    %143 = vmatpush2.msra.mxu0 0.0
    %144 = vmatprep.subr.mxu0 0.0
    %145 = vmatpush2.msra.mxu0 0.0
    %146 = vmatprep.mubr.f32.mxu0 0.0
    %147 = vmatmul.mubr.f32.gmra.mxu0 %v77
    %v148 = vpop.f32.mrf.mxu0
    %v149 = vadd.f32 %v73, %v148
    %v150 = vpop.f32.mrf.mxu0
    %151 = vmatprep.mubr.f32.mxu0 0.0
    %152 = vmatmul.mubr.f32.gmra.mxu0 %v80
    %v153 = vpop.f32.mrf.mxu0
    %v154 = vadd.f32 %v73, %v153
    %v155 = vpop.f32.mrf.mxu0
    %156 = vdwg.mxu0
    %158 = vrot.lane.b32.xlu0 %v149, 96
    %v159 = vpop.permute.xlu0 %158
    %vm160 = vcmask 64512
    %v161 = vsel %vm160, %v149, 0
    %v163 = vsel %vm160, %v159, 0
    %165 = vmatprep.subr.mxu0 0.0
    %166 = vmatpush1.xpose.msra.mxu0 0.0
    %167 = vmatprep.subr.mxu0 0.0
    %168 = vmatpush1.xpose.msra.mxu0 0.0
    %169 = vmatprep.subr.mxu0 0.0
    %170 = vmatpush1.xpose.msra.mxu0 0.0
    %171 = vmatprep.subr.mxu0 0.0
    %172 = vmatpush1.xpose.msra.mxu0 0.0
    %173 = vmatprep.subr.mxu0 0.0
    %174 = vmatpush1.xpose.msra.mxu0 0.0
    %175 = vmatprep.subr.mxu0 0.0
    %176 = vmatpush1.xpose.msra.mxu0 0.0
    %177 = vmatprep.subr.mxu0 0.0
    %178 = vmatpush1.xpose.msra.mxu0 0.0
    %179 = vmatprep.subr.mxu0 0.0
    %180 = vmatpush1.xpose.msra.mxu0 0.0
    %181 = vmatprep.subr.mxu0 0.0
    %182 = vmatpush1.xpose.msra.mxu0 0.0
    %183 = vmatprep.subr.mxu0 0.0
    %184 = vmatpush1.xpose.msra.mxu0 0.0
    %185 = vmatprep.subr.mxu0 0.0
    %186 = vmatpush1.xpose.msra.mxu0 0.0
    %187 = vmatprep.subr.mxu0 0.0
    %188 = vmatpush1.xpose.msra.mxu0 0.0
    %189 = vmatprep.subr.mxu0 0.0
    %190 = vmatpush1.xpose.msra.mxu0 0.0
    %191 = vmatprep.subr.mxu0 0.0
    %192 = vmatpush1.xpose.msra.mxu0 0.0
    %193 = vmatprep.subr.mxu0 0.0
    %194 = vmatpush1.xpose.msra.mxu0 0.0
    %195 = vmatprep.subr.mxu0 0.0
    %196 = vmatpush1.xpose.msra.mxu0 %v163
    %197 = vmatprep.subr.mxu0 0.0
    %198 = vmatpush2.xpose.msra.mxu0 0.0
    %199 = vmatprep.subr.mxu0 0.0
    %200 = vmatpush2.xpose.msra.mxu0 0.0
    %201 = vmatprep.subr.mxu0 0.0
    %202 = vmatpush2.xpose.msra.mxu0 0.0
    %203 = vmatprep.subr.mxu0 0.0
    %204 = vmatpush2.xpose.msra.mxu0 0.0
    %205 = vmatprep.subr.mxu0 0.0
    %206 = vmatpush2.xpose.msra.mxu0 0.0
    %207 = vmatprep.subr.mxu0 0.0
    %208 = vmatpush2.xpose.msra.mxu0 0.0
    %209 = vmatprep.subr.mxu0 0.0
    %210 = vmatpush2.xpose.msra.mxu0 0.0
    %211 = vmatprep.subr.mxu0 0.0
    %212 = vmatpush2.xpose.msra.mxu0 0.0
    %213 = vmatprep.subr.mxu0 0.0
    %214 = vmatpush2.xpose.msra.mxu0 0.0
    %215 = vmatprep.subr.mxu0 0.0
    %216 = vmatpush2.xpose.msra.mxu0 0.0
    %217 = vmatprep.subr.mxu0 0.0
    %218 = vmatpush2.xpose.msra.mxu0 0.0
    %219 = vmatprep.subr.mxu0 0.0
    %220 = vmatpush2.xpose.msra.mxu0 0.0
    %221 = vmatprep.subr.mxu0 0.0
    %222 = vmatpush2.xpose.msra.mxu0 0.0
    %223 = vmatprep.subr.mxu0 0.0
    %224 = vmatpush2.xpose.msra.mxu0 0.0
    %225 = vmatprep.subr.mxu0 0.0
    %226 = vmatpush2.xpose.msra.mxu0 0.0
    %227 = vmatprep.subr.mxu0 0.0
    %228 = vmatpush2.xpose.msra.mxu0 0.0
    %229 = vmatprep.mubr.f32.mxu0 0.0
    %230 = vmatmul.mubr.f32.gmra.mxu0 %v161
    %v231 = vpop.f32.mrf.mxu0
    %v232 = vadd.f32 0.0, %v231
    %v233 = vpop.f32.mrf.mxu0
    %234 = vdwg.mxu0
    %v235 = vmul.f32 %v232, 0.35355338
    %v236 = vsel %vm160, %v235, -inf
    %237 = vmax.xlane.f32.xlu0 %v236
    %v238 = vpop.xlane.xlu0 %237
    %v239 = vsub.f32 %v235, %v238
    %v240 = vmul.f32 %v239, 1.442695
    %v241 = vpow.pop %v240
    %v242 = vsel %vm160, %v241, 0.0
    %243 = vadd.xlane.f32.xlu0 %v242
    %v244 = vpop.xlane.xlu0 %243
    %v245 = vrcp.pop %v244
    %v246 = vmul.f32 %v241, %v245
    %247 = vrot.lane.b32.xlu0 %v149, 64
    %v248 = vpop.permute.xlu0 %247
    %v251 = vsel %vm160, %v246, 0
    %253 = vmatprep.subr.mxu0 0.0
    %254 = vmatpush1.msra.mxu0 0.0
    %255 = vmatprep.subr.mxu0 0.0
    %256 = vmatpush1.msra.mxu0 0.0
    %257 = vmatprep.subr.mxu0 0.0
    %258 = vmatpush1.msra.mxu0 0.0
    %259 = vmatprep.subr.mxu0 0.0
    %260 = vmatpush1.msra.mxu0 0.0
    %261 = vmatprep.subr.mxu0 0.0
    %262 = vmatpush1.msra.mxu0 0.0
    %263 = vmatprep.subr.mxu0 0.0
    %264 = vmatpush1.msra.mxu0 0.0
    %265 = vmatprep.subr.mxu0 0.0
    %266 = vmatpush1.msra.mxu0 0.0
    %267 = vmatprep.subr.mxu0 0.0
    %268 = vmatpush1.msra.mxu0 0.0
    %269 = vmatprep.subr.mxu0 0.0
    %270 = vmatpush1.msra.mxu0 0.0
    %271 = vmatprep.subr.mxu0 0.0
    %272 = vmatpush1.msra.mxu0 0.0
    %273 = vmatprep.subr.mxu0 0.0
    %274 = vmatpush1.msra.mxu0 0.0
    %275 = vmatprep.subr.mxu0 0.0
    %276 = vmatpush1.msra.mxu0 0.0
    %277 = vmatprep.subr.mxu0 0.0
    %278 = vmatpush1.msra.mxu0 0.0
    %279 = vmatprep.subr.mxu0 0.0
    %280 = vmatpush1.msra.mxu0 0.0
    %281 = vmatprep.subr.mxu0 0.0
    %282 = vmatpush1.msra.mxu0 0.0
    %283 = vmatprep.subr.mxu0 0.0
    %284 = vmatpush1.msra.mxu0 %v248
    %285 = vmatprep.subr.mxu0 0.0
    %286 = vmatpush2.msra.mxu0 0.0
    %287 = vmatprep.subr.mxu0 0.0
    %288 = vmatpush2.msra.mxu0 0.0
    %289 = vmatprep.subr.mxu0 0.0
    %290 = vmatpush2.msra.mxu0 0.0
    %291 = vmatprep.subr.mxu0 0.0
    %292 = vmatpush2.msra.mxu0 0.0
    %293 = vmatprep.subr.mxu0 0.0
    %294 = vmatpush2.msra.mxu0 0.0
    %295 = vmatprep.subr.mxu0 0.0
    %296 = vmatpush2.msra.mxu0 0.0
    %297 = vmatprep.subr.mxu0 0.0
    %298 = vmatpush2.msra.mxu0 0.0
    %299 = vmatprep.subr.mxu0 0.0
    %300 = vmatpush2.msra.mxu0 0.0
    %301 = vmatprep.subr.mxu0 0.0
    %302 = vmatpush2.msra.mxu0 0.0
    %303 = vmatprep.subr.mxu0 0.0
    %304 = vmatpush2.msra.mxu0 0.0
    %305 = vmatprep.subr.mxu0 0.0
    %306 = vmatpush2.msra.mxu0 0.0
    %307 = vmatprep.subr.mxu0 0.0
    %308 = vmatpush2.msra.mxu0 0.0
    %309 = vmatprep.subr.mxu0 0.0
    %310 = vmatpush2.msra.mxu0 0.0
    %311 = vmatprep.subr.mxu0 0.0
    %312 = vmatpush2.msra.mxu0 0.0
    %313 = vmatprep.subr.mxu0 0.0
    %314 = vmatpush2.msra.mxu0 0.0
    %315 = vmatprep.subr.mxu0 0.0
    %316 = vmatpush2.msra.mxu0 0.0
    %317 = vmatprep.mubr.f32.mxu0 0.0
    %318 = vmatmul.mubr.f32.gmra.mxu0 %v251
    %v319 = vpop.f32.mrf.mxu0
    %v320 = vadd.f32 0.0, %v319
    %v321 = vpop.f32.mrf.mxu0
    %322 = vdwg.mxu0
    %323 = vst.msk [vmem:[#allocation2] sm:$0xff] %vm160, %v320
    %324 = vrot.lane.b32.xlu0 %v149, 120
    %v325 = vpop.permute.xlu0 %324
    %326 = vrot.lane.b32.xlu0 %v149, 88
    %v327 = vpop.permute.xlu0 %326
    %v328 = vsel %vm160, %v325, 0
    %v330 = vsel %vm160, %v327, 0
    %332 = vmatprep.subr.mxu0 0.0
    %333 = vmatpush1.xpose.msra.mxu0 0.0
    %334 = vmatprep.subr.mxu0 0.0
    %335 = vmatpush1.xpose.msra.mxu0 0.0
    %336 = vmatprep.subr.mxu0 0.0
    %337 = vmatpush1.xpose.msra.mxu0 0.0
    %338 = vmatprep.subr.mxu0 0.0
    %339 = vmatpush1.xpose.msra.mxu0 0.0
    %340 = vmatprep.subr.mxu0 0.0
    %341 = vmatpush1.xpose.msra.mxu0 0.0
    %342 = vmatprep.subr.mxu0 0.0
    %343 = vmatpush1.xpose.msra.mxu0 0.0
    %344 = vmatprep.subr.mxu0 0.0
    %345 = vmatpush1.xpose.msra.mxu0 0.0
    %346 = vmatprep.subr.mxu0 0.0
    %347 = vmatpush1.xpose.msra.mxu0 0.0
    %348 = vmatprep.subr.mxu0 0.0
    %349 = vmatpush1.xpose.msra.mxu0 0.0
    %350 = vmatprep.subr.mxu0 0.0
    %351 = vmatpush1.xpose.msra.mxu0 0.0
    %352 = vmatprep.subr.mxu0 0.0
    %353 = vmatpush1.xpose.msra.mxu0 0.0
    %354 = vmatprep.subr.mxu0 0.0
    %355 = vmatpush1.xpose.msra.mxu0 0.0
    %356 = vmatprep.subr.mxu0 0.0
    %357 = vmatpush1.xpose.msra.mxu0 0.0
    %358 = vmatprep.subr.mxu0 0.0
    %359 = vmatpush1.xpose.msra.mxu0 0.0
    %360 = vmatprep.subr.mxu0 0.0
    %361 = vmatpush1.xpose.msra.mxu0 0.0
    %362 = vmatprep.subr.mxu0 0.0
    %363 = vmatpush1.xpose.msra.mxu0 %v330
    %364 = vmatprep.subr.mxu0 0.0
    %365 = vmatpush2.xpose.msra.mxu0 0.0
    %366 = vmatprep.subr.mxu0 0.0
    %367 = vmatpush2.xpose.msra.mxu0 0.0
    %368 = vmatprep.subr.mxu0 0.0
    %369 = vmatpush2.xpose.msra.mxu0 0.0
    %370 = vmatprep.subr.mxu0 0.0
    %371 = vmatpush2.xpose.msra.mxu0 0.0
    %372 = vmatprep.subr.mxu0 0.0
    %373 = vmatpush2.xpose.msra.mxu0 0.0
    %374 = vmatprep.subr.mxu0 0.0
    %375 = vmatpush2.xpose.msra.mxu0 0.0
    %376 = vmatprep.subr.mxu0 0.0
    %377 = vmatpush2.xpose.msra.mxu0 0.0
    %378 = vmatprep.subr.mxu0 0.0
    %379 = vmatpush2.xpose.msra.mxu0 0.0
    %380 = vmatprep.subr.mxu0 0.0
    %381 = vmatpush2.xpose.msra.mxu0 0.0
    %382 = vmatprep.subr.mxu0 0.0
    %383 = vmatpush2.xpose.msra.mxu0 0.0
    %384 = vmatprep.subr.mxu0 0.0
    %385 = vmatpush2.xpose.msra.mxu0 0.0
    %386 = vmatprep.subr.mxu0 0.0
    %387 = vmatpush2.xpose.msra.mxu0 0.0
    %388 = vmatprep.subr.mxu0 0.0
    %389 = vmatpush2.xpose.msra.mxu0 0.0
    %390 = vmatprep.subr.mxu0 0.0
    %391 = vmatpush2.xpose.msra.mxu0 0.0
    %392 = vmatprep.subr.mxu0 0.0
    %393 = vmatpush2.xpose.msra.mxu0 0.0
    %394 = vmatprep.subr.mxu0 0.0
    %395 = vmatpush2.xpose.msra.mxu0 0.0
    %396 = vmatprep.mubr.f32.mxu0 0.0
    %397 = vmatmul.mubr.f32.gmra.mxu0 %v328
    %v398 = vpop.f32.mrf.mxu0
    %v399 = vadd.f32 0.0, %v398
    %v400 = vpop.f32.mrf.mxu0
    %401 = vdwg.mxu0
    %v402 = vmul.f32 %v399, 0.35355338
    %v403 = vsel %vm160, %v402, -inf
    %404 = vmax.xlane.f32.xlu0 %v403
    %v405 = vpop.xlane.xlu0 %404
    %v406 = vsub.f32 %v402, %v405
    %v407 = vmul.f32 %v406, 1.442695
    %v408 = vpow.pop %v407
    %v409 = vsel %vm160, %v408, 0.0
    %410 = vadd.xlane.f32.xlu0 %v409
    %v411 = vpop.xlane.xlu0 %410
    %v412 = vrcp.pop %v411
    %v413 = vmul.f32 %v408, %v412
    %414 = vrot.lane.b32.xlu0 %v149, 56
    %v415 = vpop.permute.xlu0 %414
    %v418 = vsel %vm160, %v413, 0
    %420 = vmatprep.subr.mxu0 0.0
    %421 = vmatpush1.msra.mxu0 0.0
    %422 = vmatprep.subr.mxu0 0.0
    %423 = vmatpush1.msra.mxu0 0.0
    %424 = vmatprep.subr.mxu0 0.0
    %425 = vmatpush1.msra.mxu0 0.0
    %426 = vmatprep.subr.mxu0 0.0
    %427 = vmatpush1.msra.mxu0 0.0
    %428 = vmatprep.subr.mxu0 0.0
    %429 = vmatpush1.msra.mxu0 0.0
    %430 = vmatprep.subr.mxu0 0.0
    %431 = vmatpush1.msra.mxu0 0.0
    %432 = vmatprep.subr.mxu0 0.0
    %433 = vmatpush1.msra.mxu0 0.0
    %434 = vmatprep.subr.mxu0 0.0
    %435 = vmatpush1.msra.mxu0 0.0
    %436 = vmatprep.subr.mxu0 0.0
    %437 = vmatpush1.msra.mxu0 0.0
    %438 = vmatprep.subr.mxu0 0.0
    %439 = vmatpush1.msra.mxu0 0.0
    %440 = vmatprep.subr.mxu0 0.0
    %441 = vmatpush1.msra.mxu0 0.0
    %442 = vmatprep.subr.mxu0 0.0
    %443 = vmatpush1.msra.mxu0 0.0
    %444 = vmatprep.subr.mxu0 0.0
    %445 = vmatpush1.msra.mxu0 0.0
    %446 = vmatprep.subr.mxu0 0.0
    %447 = vmatpush1.msra.mxu0 0.0
    %448 = vmatprep.subr.mxu0 0.0
    %449 = vmatpush1.msra.mxu0 0.0
    %450 = vmatprep.subr.mxu0 0.0
    %451 = vmatpush1.msra.mxu0 %v415
    %452 = vmatprep.subr.mxu0 0.0
    %453 = vmatpush2.msra.mxu0 0.0
    %454 = vmatprep.subr.mxu0 0.0
    %455 = vmatpush2.msra.mxu0 0.0
    %456 = vmatprep.subr.mxu0 0.0
    %457 = vmatpush2.msra.mxu0 0.0
    %458 = vmatprep.subr.mxu0 0.0
    %459 = vmatpush2.msra.mxu0 0.0
    %460 = vmatprep.subr.mxu0 0.0
    %461 = vmatpush2.msra.mxu0 0.0
    %462 = vmatprep.subr.mxu0 0.0
    %463 = vmatpush2.msra.mxu0 0.0
    %464 = vmatprep.subr.mxu0 0.0
    %465 = vmatpush2.msra.mxu0 0.0
    %466 = vmatprep.subr.mxu0 0.0
    %467 = vmatpush2.msra.mxu0 0.0
    %468 = vmatprep.subr.mxu0 0.0
    %469 = vmatpush2.msra.mxu0 0.0
    %470 = vmatprep.subr.mxu0 0.0
    %471 = vmatpush2.msra.mxu0 0.0
    %472 = vmatprep.subr.mxu0 0.0
    %473 = vmatpush2.msra.mxu0 0.0
    %474 = vmatprep.subr.mxu0 0.0
    %475 = vmatpush2.msra.mxu0 0.0
    %476 = vmatprep.subr.mxu0 0.0
    %477 = vmatpush2.msra.mxu0 0.0
    %478 = vmatprep.subr.mxu0 0.0
    %479 = vmatpush2.msra.mxu0 0.0
    %480 = vmatprep.subr.mxu0 0.0
    %481 = vmatpush2.msra.mxu0 0.0
    %482 = vmatprep.subr.mxu0 0.0
    %483 = vmatpush2.msra.mxu0 0.0
    %484 = vmatprep.mubr.f32.mxu0 0.0
    %485 = vmatmul.mubr.f32.gmra.mxu0 %v418
    %v486 = vpop.f32.mrf.mxu0
    %v487 = vadd.f32 0.0, %v486
    %v488 = vpop.f32.mrf.mxu0
    %489 = vdwg.mxu0
    %491 = vrot.lane.b32.xlu0 %v487, 8
    %v492 = vpop.permute.xlu0 %491
    %vm494 = vcmask 130112
    %495 = vst.msk [vmem:[#allocation2] sm:$0xff] %vm494, %v492
    %496 = vrot.lane.b32.xlu0 %v149, 112
    %v497 = vpop.permute.xlu0 %496
    %498 = vrot.lane.b32.xlu0 %v149, 80
    %v499 = vpop.permute.xlu0 %498
    %v500 = vsel %vm160, %v497, 0
    %v502 = vsel %vm160, %v499, 0
    %504 = vmatprep.subr.mxu0 0.0
    %505 = vmatpush1.xpose.msra.mxu0 0.0
    %506 = vmatprep.subr.mxu0 0.0
    %507 = vmatpush1.xpose.msra.mxu0 0.0
    %508 = vmatprep.subr.mxu0 0.0
    %509 = vmatpush1.xpose.msra.mxu0 0.0
    %510 = vmatprep.subr.mxu0 0.0
    %511 = vmatpush1.xpose.msra.mxu0 0.0
    %512 = vmatprep.subr.mxu0 0.0
    %513 = vmatpush1.xpose.msra.mxu0 0.0
    %514 = vmatprep.subr.mxu0 0.0
    %515 = vmatpush1.xpose.msra.mxu0 0.0
    %516 = vmatprep.subr.mxu0 0.0
    %517 = vmatpush1.xpose.msra.mxu0 0.0
    %518 = vmatprep.subr.mxu0 0.0
    %519 = vmatpush1.xpose.msra.mxu0 0.0
    %520 = vmatprep.subr.mxu0 0.0
    %521 = vmatpush1.xpose.msra.mxu0 0.0
    %522 = vmatprep.subr.mxu0 0.0
    %523 = vmatpush1.xpose.msra.mxu0 0.0
    %524 = vmatprep.subr.mxu0 0.0
    %525 = vmatpush1.xpose.msra.mxu0 0.0
    %526 = vmatprep.subr.mxu0 0.0
    %527 = vmatpush1.xpose.msra.mxu0 0.0
    %528 = vmatprep.subr.mxu0 0.0
    %529 = vmatpush1.xpose.msra.mxu0 0.0
    %530 = vmatprep.subr.mxu0 0.0
    %531 = vmatpush1.xpose.msra.mxu0 0.0
    %532 = vmatprep.subr.mxu0 0.0
    %533 = vmatpush1.xpose.msra.mxu0 0.0
    %534 = vmatprep.subr.mxu0 0.0
    %535 = vmatpush1.xpose.msra.mxu0 %v502
    %536 = vmatprep.subr.mxu0 0.0
    %537 = vmatpush2.xpose.msra.mxu0 0.0
    %538 = vmatprep.subr.mxu0 0.0
    %539 = vmatpush2.xpose.msra.mxu0 0.0
    %540 = vmatprep.subr.mxu0 0.0
    %541 = vmatpush2.xpose.msra.mxu0 0.0
    %542 = vmatprep.subr.mxu0 0.0
    %543 = vmatpush2.xpose.msra.mxu0 0.0
    %544 = vmatprep.subr.mxu0 0.0
    %545 = vmatpush2.xpose.msra.mxu0 0.0
    %546 = vmatprep.subr.mxu0 0.0
    %547 = vmatpush2.xpose.msra.mxu0 0.0
    %548 = vmatprep.subr.mxu0 0.0
    %549 = vmatpush2.xpose.msra.mxu0 0.0
    %550 = vmatprep.subr.mxu0 0.0
    %551 = vmatpush2.xpose.msra.mxu0 0.0
    %552 = vmatprep.subr.mxu0 0.0
    %553 = vmatpush2.xpose.msra.mxu0 0.0
    %554 = vmatprep.subr.mxu0 0.0
    %555 = vmatpush2.xpose.msra.mxu0 0.0
    %556 = vmatprep.subr.mxu0 0.0
    %557 = vmatpush2.xpose.msra.mxu0 0.0
    %558 = vmatprep.subr.mxu0 0.0
    %559 = vmatpush2.xpose.msra.mxu0 0.0
    %560 = vmatprep.subr.mxu0 0.0
    %561 = vmatpush2.xpose.msra.mxu0 0.0
    %562 = vmatprep.subr.mxu0 0.0
    %563 = vmatpush2.xpose.msra.mxu0 0.0
    %564 = vmatprep.subr.mxu0 0.0
    %565 = vmatpush2.xpose.msra.mxu0 0.0
    %566 = vmatprep.subr.mxu0 0.0
    %567 = vmatpush2.xpose.msra.mxu0 0.0
    %568 = vmatprep.mubr.f32.mxu0 0.0
    %569 = vmatmul.mubr.f32.gmra.mxu0 %v500
    %v570 = vpop.f32.mrf.mxu0
    %v571 = vadd.f32 0.0, %v570
    %v572 = vpop.f32.mrf.mxu0
    %573 = vdwg.mxu0
    %v574 = vmul.f32 %v571, 0.35355338
    %v575 = vsel %vm160, %v574, -inf
    %576 = vmax.xlane.f32.xlu0 %v575
    %v577 = vpop.xlane.xlu0 %576
    %v578 = vsub.f32 %v574, %v577
    %v579 = vmul.f32 %v578, 1.442695
    %v580 = vpow.pop %v579
    %v581 = vsel %vm160, %v580, 0.0
    %582 = vadd.xlane.f32.xlu0 %v581
    %v583 = vpop.xlane.xlu0 %582
    %v584 = vrcp.pop %v583
    %v585 = vmul.f32 %v580, %v584
    %586 = vrot.lane.b32.xlu0 %v149, 48
    %v587 = vpop.permute.xlu0 %586
    %v590 = vsel %vm160, %v585, 0
    %592 = vmatprep.subr.mxu0 0.0
    %593 = vmatpush1.msra.mxu0 0.0
    %594 = vmatprep.subr.mxu0 0.0
    %595 = vmatpush1.msra.mxu0 0.0
    %596 = vmatprep.subr.mxu0 0.0
    %597 = vmatpush1.msra.mxu0 0.0
    %598 = vmatprep.subr.mxu0 0.0
    %599 = vmatpush1.msra.mxu0 0.0
    %600 = vmatprep.subr.mxu0 0.0
    %601 = vmatpush1.msra.mxu0 0.0
    %602 = vmatprep.subr.mxu0 0.0
    %603 = vmatpush1.msra.mxu0 0.0
    %604 = vmatprep.subr.mxu0 0.0
    %605 = vmatpush1.msra.mxu0 0.0
    %606 = vmatprep.subr.mxu0 0.0
    %607 = vmatpush1.msra.mxu0 0.0
    %608 = vmatprep.subr.mxu0 0.0
    %609 = vmatpush1.msra.mxu0 0.0
    %610 = vmatprep.subr.mxu0 0.0
    %611 = vmatpush1.msra.mxu0 0.0
    %612 = vmatprep.subr.mxu0 0.0
    %613 = vmatpush1.msra.mxu0 0.0
    %614 = vmatprep.subr.mxu0 0.0
    %615 = vmatpush1.msra.mxu0 0.0
    %616 = vmatprep.subr.mxu0 0.0
    %617 = vmatpush1.msra.mxu0 0.0
    %618 = vmatprep.subr.mxu0 0.0
    %619 = vmatpush1.msra.mxu0 0.0
    %620 = vmatprep.subr.mxu0 0.0
    %621 = vmatpush1.msra.mxu0 0.0
    %622 = vmatprep.subr.mxu0 0.0
    %623 = vmatpush1.msra.mxu0 %v587
    %624 = vmatprep.subr.mxu0 0.0
    %625 = vmatpush2.msra.mxu0 0.0
    %626 = vmatprep.subr.mxu0 0.0
    %627 = vmatpush2.msra.mxu0 0.0
    %628 = vmatprep.subr.mxu0 0.0
    %629 = vmatpush2.msra.mxu0 0.0
    %630 = vmatprep.subr.mxu0 0.0
    %631 = vmatpush2.msra.mxu0 0.0
    %632 = vmatprep.subr.mxu0 0.0
    %633 = vmatpush2.msra.mxu0 0.0
    %634 = vmatprep.subr.mxu0 0.0
    %635 = vmatpush2.msra.mxu0 0.0
    %636 = vmatprep.subr.mxu0 0.0
    %637 = vmatpush2.msra.mxu0 0.0
    %638 = vmatprep.subr.mxu0 0.0
    %639 = vmatpush2.msra.mxu0 0.0
    %640 = vmatprep.subr.mxu0 0.0
    %641 = vmatpush2.msra.mxu0 0.0
    %642 = vmatprep.subr.mxu0 0.0
    %643 = vmatpush2.msra.mxu0 0.0
    %644 = vmatprep.subr.mxu0 0.0
    %645 = vmatpush2.msra.mxu0 0.0
    %646 = vmatprep.subr.mxu0 0.0
    %647 = vmatpush2.msra.mxu0 0.0
    %648 = vmatprep.subr.mxu0 0.0
    %649 = vmatpush2.msra.mxu0 0.0
    %650 = vmatprep.subr.mxu0 0.0
    %651 = vmatpush2.msra.mxu0 0.0
    %652 = vmatprep.subr.mxu0 0.0
    %653 = vmatpush2.msra.mxu0 0.0
    %654 = vmatprep.subr.mxu0 0.0
    %655 = vmatpush2.msra.mxu0 0.0
    %656 = vmatprep.mubr.f32.mxu0 0.0
    %657 = vmatmul.mubr.f32.gmra.mxu0 %v590
    %v658 = vpop.f32.mrf.mxu0
    %v659 = vadd.f32 0.0, %v658
    %v660 = vpop.f32.mrf.mxu0
    %661 = vdwg.mxu0
    %663 = vrot.lane.b32.xlu0 %v659, 16
    %v664 = vpop.permute.xlu0 %663
    %vm666 = vcmask 195712
    %667 = vst.msk [vmem:[#allocation2] sm:$0xff] %vm666, %v664
    %668 = vrot.lane.b32.xlu0 %v149, 104
    %v669 = vpop.permute.xlu0 %668
    %670 = vrot.lane.b32.xlu0 %v149, 72
    %v671 = vpop.permute.xlu0 %670
    %v672 = vsel %vm160, %v669, 0
    %v674 = vsel %vm160, %v671, 0
    %676 = vmatprep.subr.mxu0 0.0
    %677 = vmatpush1.xpose.msra.mxu0 0.0
    %678 = vmatprep.subr.mxu0 0.0
    %679 = vmatpush1.xpose.msra.mxu0 0.0
    %680 = vmatprep.subr.mxu0 0.0
    %681 = vmatpush1.xpose.msra.mxu0 0.0
    %682 = vmatprep.subr.mxu0 0.0
    %683 = vmatpush1.xpose.msra.mxu0 0.0
    %684 = vmatprep.subr.mxu0 0.0
    %685 = vmatpush1.xpose.msra.mxu0 0.0
    %686 = vmatprep.subr.mxu0 0.0
    %687 = vmatpush1.xpose.msra.mxu0 0.0
    %688 = vmatprep.subr.mxu0 0.0
    %689 = vmatpush1.xpose.msra.mxu0 0.0
    %690 = vmatprep.subr.mxu0 0.0
    %691 = vmatpush1.xpose.msra.mxu0 0.0
    %692 = vmatprep.subr.mxu0 0.0
    %693 = vmatpush1.xpose.msra.mxu0 0.0
    %694 = vmatprep.subr.mxu0 0.0
    %695 = vmatpush1.xpose.msra.mxu0 0.0
    %696 = vmatprep.subr.mxu0 0.0
    %697 = vmatpush1.xpose.msra.mxu0 0.0
    %698 = vmatprep.subr.mxu0 0.0
    %699 = vmatpush1.xpose.msra.mxu0 0.0
    %700 = vmatprep.subr.mxu0 0.0
    %701 = vmatpush1.xpose.msra.mxu0 0.0
    %702 = vmatprep.subr.mxu0 0.0
    %703 = vmatpush1.xpose.msra.mxu0 0.0
    %704 = vmatprep.subr.mxu0 0.0
    %705 = vmatpush1.xpose.msra.mxu0 0.0
    %706 = vmatprep.subr.mxu0 0.0
    %707 = vmatpush1.xpose.msra.mxu0 %v674
    %708 = vmatprep.subr.mxu0 0.0
    %709 = vmatpush2.xpose.msra.mxu0 0.0
    %710 = vmatprep.subr.mxu0 0.0
    %711 = vmatpush2.xpose.msra.mxu0 0.0
    %712 = vmatprep.subr.mxu0 0.0
    %713 = vmatpush2.xpose.msra.mxu0 0.0
    %714 = vmatprep.subr.mxu0 0.0
    %715 = vmatpush2.xpose.msra.mxu0 0.0
    %716 = vmatprep.subr.mxu0 0.0
    %717 = vmatpush2.xpose.msra.mxu0 0.0
    %718 = vmatprep.subr.mxu0 0.0
    %719 = vmatpush2.xpose.msra.mxu0 0.0
    %720 = vmatprep.subr.mxu0 0.0
    %721 = vmatpush2.xpose.msra.mxu0 0.0
    %722 = vmatprep.subr.mxu0 0.0
    %723 = vmatpush2.xpose.msra.mxu0 0.0
    %724 = vmatprep.subr.mxu0 0.0
    %725 = vmatpush2.xpose.msra.mxu0 0.0
    %726 = vmatprep.subr.mxu0 0.0
    %727 = vmatpush2.xpose.msra.mxu0 0.0
    %728 = vmatprep.subr.mxu0 0.0
    %729 = vmatpush2.xpose.msra.mxu0 0.0
    %730 = vmatprep.subr.mxu0 0.0
    %731 = vmatpush2.xpose.msra.mxu0 0.0
    %732 = vmatprep.subr.mxu0 0.0
    %733 = vmatpush2.xpose.msra.mxu0 0.0
    %734 = vmatprep.subr.mxu0 0.0
    %735 = vmatpush2.xpose.msra.mxu0 0.0
    %736 = vmatprep.subr.mxu0 0.0
    %737 = vmatpush2.xpose.msra.mxu0 0.0
    %738 = vmatprep.subr.mxu0 0.0
    %739 = vmatpush2.xpose.msra.mxu0 0.0
    %740 = vmatprep.mubr.f32.mxu0 0.0
    %741 = vmatmul.mubr.f32.gmra.mxu0 %v672
    %v742 = vpop.f32.mrf.mxu0
    %v743 = vadd.f32 0.0, %v742
    %v744 = vpop.f32.mrf.mxu0
    %745 = vdwg.mxu0
    %v746 = vmul.f32 %v743, 0.35355338
    %v747 = vsel %vm160, %v746, -inf
    %748 = vmax.xlane.f32.xlu0 %v747
    %v749 = vpop.xlane.xlu0 %748
    %v750 = vsub.f32 %v746, %v749
    %v751 = vmul.f32 %v750, 1.442695
    %v752 = vpow.pop %v751
    %v753 = vsel %vm160, %v752, 0.0
    %754 = vadd.xlane.f32.xlu0 %v753
    %v755 = vpop.xlane.xlu0 %754
    %v756 = vrcp.pop %v755
    %v757 = vmul.f32 %v752, %v756
    %758 = vrot.lane.b32.xlu0 %v149, 40
    %v759 = vpop.permute.xlu0 %758
    %v762 = vsel %vm160, %v757, 0
    %764 = vmatprep.subr.mxu0 0.0
    %765 = vmatpush1.msra.mxu0 0.0
    %766 = vmatprep.subr.mxu0 0.0
    %767 = vmatpush1.msra.mxu0 0.0
    %768 = vmatprep.subr.mxu0 0.0
    %769 = vmatpush1.msra.mxu0 0.0
    %770 = vmatprep.subr.mxu0 0.0
    %771 = vmatpush1.msra.mxu0 0.0
    %772 = vmatprep.subr.mxu0 0.0
    %773 = vmatpush1.msra.mxu0 0.0
    %774 = vmatprep.subr.mxu0 0.0
    %775 = vmatpush1.msra.mxu0 0.0
    %776 = vmatprep.subr.mxu0 0.0
    %777 = vmatpush1.msra.mxu0 0.0
    %778 = vmatprep.subr.mxu0 0.0
    %779 = vmatpush1.msra.mxu0 0.0
    %780 = vmatprep.subr.mxu0 0.0
    %781 = vmatpush1.msra.mxu0 0.0
    %782 = vmatprep.subr.mxu0 0.0
    %783 = vmatpush1.msra.mxu0 0.0
    %784 = vmatprep.subr.mxu0 0.0
    %785 = vmatpush1.msra.mxu0 0.0
    %786 = vmatprep.subr.mxu0 0.0
    %787 = vmatpush1.msra.mxu0 0.0
    %788 = vmatprep.subr.mxu0 0.0
    %789 = vmatpush1.msra.mxu0 0.0
    %790 = vmatprep.subr.mxu0 0.0
    %791 = vmatpush1.msra.mxu0 0.0
    %792 = vmatprep.subr.mxu0 0.0
    %793 = vmatpush1.msra.mxu0 0.0
    %794 = vmatprep.subr.mxu0 0.0
    %795 = vmatpush1.msra.mxu0 %v759
    %796 = vmatprep.subr.mxu0 0.0
    %797 = vmatpush2.msra.mxu0 0.0
    %798 = vmatprep.subr.mxu0 0.0
    %799 = vmatpush2.msra.mxu0 0.0
    %800 = vmatprep.subr.mxu0 0.0
    %801 = vmatpush2.msra.mxu0 0.0
    %802 = vmatprep.subr.mxu0 0.0
    %803 = vmatpush2.msra.mxu0 0.0
    %804 = vmatprep.subr.mxu0 0.0
    %805 = vmatpush2.msra.mxu0 0.0
    %806 = vmatprep.subr.mxu0 0.0
    %807 = vmatpush2.msra.mxu0 0.0
    %808 = vmatprep.subr.mxu0 0.0
    %809 = vmatpush2.msra.mxu0 0.0
    %810 = vmatprep.subr.mxu0 0.0
    %811 = vmatpush2.msra.mxu0 0.0
    %812 = vmatprep.subr.mxu0 0.0
    %813 = vmatpush2.msra.mxu0 0.0
    %814 = vmatprep.subr.mxu0 0.0
    %815 = vmatpush2.msra.mxu0 0.0
    %816 = vmatprep.subr.mxu0 0.0
    %817 = vmatpush2.msra.mxu0 0.0
    %818 = vmatprep.subr.mxu0 0.0
    %819 = vmatpush2.msra.mxu0 0.0
    %820 = vmatprep.subr.mxu0 0.0
    %821 = vmatpush2.msra.mxu0 0.0
    %822 = vmatprep.subr.mxu0 0.0
    %823 = vmatpush2.msra.mxu0 0.0
    %824 = vmatprep.subr.mxu0 0.0
    %825 = vmatpush2.msra.mxu0 0.0
    %826 = vmatprep.subr.mxu0 0.0
    %827 = vmatpush2.msra.mxu0 0.0
    %828 = vmatprep.mubr.f32.mxu0 0.0
    %829 = vmatmul.mubr.f32.gmra.mxu0 %v762
    %v830 = vpop.f32.mrf.mxu0
    %v831 = vadd.f32 0.0, %v830
    %v832 = vpop.f32.mrf.mxu0
    %833 = vdwg.mxu0
    %835 = vrot.lane.b32.xlu0 %v831, 24
    %v836 = vpop.permute.xlu0 %835
    %vm838 = vcmask 261312
    %839 = vst.msk [vmem:[#allocation2] sm:$0xff] %vm838, %v836
    %841 = vrot.lane.b32.xlu0 %v154, 96
    %v842 = vpop.permute.xlu0 %841
    %v843 = vsel %vm160, %v154, 0
    %v845 = vsel %vm160, %v842, 0
    %847 = vmatprep.subr.mxu0 0.0
    %848 = vmatpush1.xpose.msra.mxu0 0.0
    %849 = vmatprep.subr.mxu0 0.0
    %850 = vmatpush1.xpose.msra.mxu0 0.0
    %851 = vmatprep.subr.mxu0 0.0
    %852 = vmatpush1.xpose.msra.mxu0 0.0
    %853 = vmatprep.subr.mxu0 0.0
    %854 = vmatpush1.xpose.msra.mxu0 0.0
    %855 = vmatprep.subr.mxu0 0.0
    %856 = vmatpush1.xpose.msra.mxu0 0.0
    %857 = vmatprep.subr.mxu0 0.0
    %858 = vmatpush1.xpose.msra.mxu0 0.0
    %859 = vmatprep.subr.mxu0 0.0
    %860 = vmatpush1.xpose.msra.mxu0 0.0
    %861 = vmatprep.subr.mxu0 0.0
    %862 = vmatpush1.xpose.msra.mxu0 0.0
    %863 = vmatprep.subr.mxu0 0.0
    %864 = vmatpush1.xpose.msra.mxu0 0.0
    %865 = vmatprep.subr.mxu0 0.0
    %866 = vmatpush1.xpose.msra.mxu0 0.0
    %867 = vmatprep.subr.mxu0 0.0
    %868 = vmatpush1.xpose.msra.mxu0 0.0
    %869 = vmatprep.subr.mxu0 0.0
    %870 = vmatpush1.xpose.msra.mxu0 0.0
    %871 = vmatprep.subr.mxu0 0.0
    %872 = vmatpush1.xpose.msra.mxu0 0.0
    %873 = vmatprep.subr.mxu0 0.0
    %874 = vmatpush1.xpose.msra.mxu0 0.0
    %875 = vmatprep.subr.mxu0 0.0
    %876 = vmatpush1.xpose.msra.mxu0 0.0
    %877 = vmatprep.subr.mxu0 0.0
    %878 = vmatpush1.xpose.msra.mxu0 %v845
    %879 = vmatprep.subr.mxu0 0.0
    %880 = vmatpush2.xpose.msra.mxu0 0.0
    %881 = vmatprep.subr.mxu0 0.0
    %882 = vmatpush2.xpose.msra.mxu0 0.0
    %883 = vmatprep.subr.mxu0 0.0
    %884 = vmatpush2.xpose.msra.mxu0 0.0
    %885 = vmatprep.subr.mxu0 0.0
    %886 = vmatpush2.xpose.msra.mxu0 0.0
    %887 = vmatprep.subr.mxu0 0.0
    %888 = vmatpush2.xpose.msra.mxu0 0.0
    %889 = vmatprep.subr.mxu0 0.0
    %890 = vmatpush2.xpose.msra.mxu0 0.0
    %891 = vmatprep.subr.mxu0 0.0
    %892 = vmatpush2.xpose.msra.mxu0 0.0
    %893 = vmatprep.subr.mxu0 0.0
    %894 = vmatpush2.xpose.msra.mxu0 0.0
    %895 = vmatprep.subr.mxu0 0.0
    %896 = vmatpush2.xpose.msra.mxu0 0.0
    %897 = vmatprep.subr.mxu0 0.0
    %898 = vmatpush2.xpose.msra.mxu0 0.0
    %899 = vmatprep.subr.mxu0 0.0
    %900 = vmatpush2.xpose.msra.mxu0 0.0
    %901 = vmatprep.subr.mxu0 0.0
    %902 = vmatpush2.xpose.msra.mxu0 0.0
    %903 = vmatprep.subr.mxu0 0.0
    %904 = vmatpush2.xpose.msra.mxu0 0.0
    %905 = vmatprep.subr.mxu0 0.0
    %906 = vmatpush2.xpose.msra.mxu0 0.0
    %907 = vmatprep.subr.mxu0 0.0
    %908 = vmatpush2.xpose.msra.mxu0 0.0
    %909 = vmatprep.subr.mxu0 0.0
    %910 = vmatpush2.xpose.msra.mxu0 0.0
    %911 = vmatprep.mubr.f32.mxu0 0.0
    %912 = vmatmul.mubr.f32.gmra.mxu0 %v843
    %v913 = vpop.f32.mrf.mxu0
    %v914 = vadd.f32 0.0, %v913
    %v915 = vpop.f32.mrf.mxu0
    %916 = vdwg.mxu0
    %v917 = vmul.f32 %v914, 0.35355338
    %v918 = vsel %vm160, %v917, -inf
    %919 = vmax.xlane.f32.xlu0 %v918
    %v920 = vpop.xlane.xlu0 %919
    %v921 = vsub.f32 %v917, %v920
    %v922 = vmul.f32 %v921, 1.442695
    %v923 = vpow.pop %v922
    %v924 = vsel %vm160, %v923, 0.0
    %925 = vadd.xlane.f32.xlu0 %v924
    %v926 = vpop.xlane.xlu0 %925
    %v927 = vrcp.pop %v926
    %v928 = vmul.f32 %v923, %v927
    %929 = vrot.lane.b32.xlu0 %v154, 64
    %v930 = vpop.permute.xlu0 %929
    %v933 = vsel %vm160, %v928, 0
    %935 = vmatprep.subr.mxu0 0.0
    %936 = vmatpush1.msra.mxu0 0.0
    %937 = vmatprep.subr.mxu0 0.0
    %938 = vmatpush1.msra.mxu0 0.0
    %939 = vmatprep.subr.mxu0 0.0
    %940 = vmatpush1.msra.mxu0 0.0
    %941 = vmatprep.subr.mxu0 0.0
    %942 = vmatpush1.msra.mxu0 0.0
    %943 = vmatprep.subr.mxu0 0.0
    %944 = vmatpush1.msra.mxu0 0.0
    %945 = vmatprep.subr.mxu0 0.0
    %946 = vmatpush1.msra.mxu0 0.0
    %947 = vmatprep.subr.mxu0 0.0
    %948 = vmatpush1.msra.mxu0 0.0
    %949 = vmatprep.subr.mxu0 0.0
    %950 = vmatpush1.msra.mxu0 0.0
    %951 = vmatprep.subr.mxu0 0.0
    %952 = vmatpush1.msra.mxu0 0.0
    %953 = vmatprep.subr.mxu0 0.0
    %954 = vmatpush1.msra.mxu0 0.0
    %955 = vmatprep.subr.mxu0 0.0
    %956 = vmatpush1.msra.mxu0 0.0
    %957 = vmatprep.subr.mxu0 0.0
    %958 = vmatpush1.msra.mxu0 0.0
    %959 = vmatprep.subr.mxu0 0.0
    %960 = vmatpush1.msra.mxu0 0.0
    %961 = vmatprep.subr.mxu0 0.0
    %962 = vmatpush1.msra.mxu0 0.0
    %963 = vmatprep.subr.mxu0 0.0
    %964 = vmatpush1.msra.mxu0 0.0
    %965 = vmatprep.subr.mxu0 0.0
    %966 = vmatpush1.msra.mxu0 %v930
    %967 = vmatprep.subr.mxu0 0.0
    %968 = vmatpush2.msra.mxu0 0.0
    %969 = vmatprep.subr.mxu0 0.0
    %970 = vmatpush2.msra.mxu0 0.0
    %971 = vmatprep.subr.mxu0 0.0
    %972 = vmatpush2.msra.mxu0 0.0
    %973 = vmatprep.subr.mxu0 0.0
    %974 = vmatpush2.msra.mxu0 0.0
    %975 = vmatprep.subr.mxu0 0.0
    %976 = vmatpush2.msra.mxu0 0.0
    %977 = vmatprep.subr.mxu0 0.0
    %978 = vmatpush2.msra.mxu0 0.0
    %979 = vmatprep.subr.mxu0 0.0
    %980 = vmatpush2.msra.mxu0 0.0
    %981 = vmatprep.subr.mxu0 0.0
    %982 = vmatpush2.msra.mxu0 0.0
    %983 = vmatprep.subr.mxu0 0.0
    %984 = vmatpush2.msra.mxu0 0.0
    %985 = vmatprep.subr.mxu0 0.0
    %986 = vmatpush2.msra.mxu0 0.0
    %987 = vmatprep.subr.mxu0 0.0
    %988 = vmatpush2.msra.mxu0 0.0
    %989 = vmatprep.subr.mxu0 0.0
    %990 = vmatpush2.msra.mxu0 0.0
    %991 = vmatprep.subr.mxu0 0.0
    %992 = vmatpush2.msra.mxu0 0.0
    %993 = vmatprep.subr.mxu0 0.0
    %994 = vmatpush2.msra.mxu0 0.0
    %995 = vmatprep.subr.mxu0 0.0
    %996 = vmatpush2.msra.mxu0 0.0
    %997 = vmatprep.subr.mxu0 0.0
    %998 = vmatpush2.msra.mxu0 0.0
    %999 = vmatprep.mubr.f32.mxu0 0.0
    %1000 = vmatmul.mubr.f32.gmra.mxu0 %v933
    %v1001 = vpop.f32.mrf.mxu0
    %v1002 = vadd.f32 0.0, %v1001
    %v1003 = vpop.f32.mrf.mxu0
    %1004 = vdwg.mxu0
    %1005 = vst.msk [vmem:[#allocation2 + $0x8] sm:$0xff] %vm160, %v1002
    %1006 = vrot.lane.b32.xlu0 %v154, 120
    %v1007 = vpop.permute.xlu0 %1006
    %1008 = vrot.lane.b32.xlu0 %v154, 88
    %v1009 = vpop.permute.xlu0 %1008
    %v1010 = vsel %vm160, %v1007, 0
    %v1012 = vsel %vm160, %v1009, 0
    %1014 = vmatprep.subr.mxu0 0.0
    %1015 = vmatpush1.xpose.msra.mxu0 0.0
    %1016 = vmatprep.subr.mxu0 0.0
    %1017 = vmatpush1.xpose.msra.mxu0 0.0
    %1018 = vmatprep.subr.mxu0 0.0
    %1019 = vmatpush1.xpose.msra.mxu0 0.0
    %1020 = vmatprep.subr.mxu0 0.0
    %1021 = vmatpush1.xpose.msra.mxu0 0.0
    %1022 = vmatprep.subr.mxu0 0.0
    %1023 = vmatpush1.xpose.msra.mxu0 0.0
    %1024 = vmatprep.subr.mxu0 0.0
    %1025 = vmatpush1.xpose.msra.mxu0 0.0
    %1026 = vmatprep.subr.mxu0 0.0
    %1027 = vmatpush1.xpose.msra.mxu0 0.0
    %1028 = vmatprep.subr.mxu0 0.0
    %1029 = vmatpush1.xpose.msra.mxu0 0.0
    %1030 = vmatprep.subr.mxu0 0.0
    %1031 = vmatpush1.xpose.msra.mxu0 0.0
    %1032 = vmatprep.subr.mxu0 0.0
    %1033 = vmatpush1.xpose.msra.mxu0 0.0
    %1034 = vmatprep.subr.mxu0 0.0
    %1035 = vmatpush1.xpose.msra.mxu0 0.0
    %1036 = vmatprep.subr.mxu0 0.0
    %1037 = vmatpush1.xpose.msra.mxu0 0.0
    %1038 = vmatprep.subr.mxu0 0.0
    %1039 = vmatpush1.xpose.msra.mxu0 0.0
    %1040 = vmatprep.subr.mxu0 0.0
    %1041 = vmatpush1.xpose.msra.mxu0 0.0
    %1042 = vmatprep.subr.mxu0 0.0
    %1043 = vmatpush1.xpose.msra.mxu0 0.0
    %1044 = vmatprep.subr.mxu0 0.0
    %1045 = vmatpush1.xpose.msra.mxu0 %v1012
    %1046 = vmatprep.subr.mxu0 0.0
    %1047 = vmatpush2.xpose.msra.mxu0 0.0
    %1048 = vmatprep.subr.mxu0 0.0
    %1049 = vmatpush2.xpose.msra.mxu0 0.0
    %1050 = vmatprep.subr.mxu0 0.0
    %1051 = vmatpush2.xpose.msra.mxu0 0.0
    %1052 = vmatprep.subr.mxu0 0.0
    %1053 = vmatpush2.xpose.msra.mxu0 0.0
    %1054 = vmatprep.subr.mxu0 0.0
    %1055 = vmatpush2.xpose.msra.mxu0 0.0
    %1056 = vmatprep.subr.mxu0 0.0
    %1057 = vmatpush2.xpose.msra.mxu0 0.0
    %1058 = vmatprep.subr.mxu0 0.0
    %1059 = vmatpush2.xpose.msra.mxu0 0.0
    %1060 = vmatprep.subr.mxu0 0.0
    %1061 = vmatpush2.xpose.msra.mxu0 0.0
    %1062 = vmatprep.subr.mxu0 0.0
    %1063 = vmatpush2.xpose.msra.mxu0 0.0
    %1064 = vmatprep.subr.mxu0 0.0
    %1065 = vmatpush2.xpose.msra.mxu0 0.0
    %1066 = vmatprep.subr.mxu0 0.0
    %1067 = vmatpush2.xpose.msra.mxu0 0.0
    %1068 = vmatprep.subr.mxu0 0.0
    %1069 = vmatpush2.xpose.msra.mxu0 0.0
    %1070 = vmatprep.subr.mxu0 0.0
    %1071 = vmatpush2.xpose.msra.mxu0 0.0
    %1072 = vmatprep.subr.mxu0 0.0
    %1073 = vmatpush2.xpose.msra.mxu0 0.0
    %1074 = vmatprep.subr.mxu0 0.0
    %1075 = vmatpush2.xpose.msra.mxu0 0.0
    %1076 = vmatprep.subr.mxu0 0.0
    %1077 = vmatpush2.xpose.msra.mxu0 0.0
    %1078 = vmatprep.mubr.f32.mxu0 0.0
    %1079 = vmatmul.mubr.f32.gmra.mxu0 %v1010
    %v1080 = vpop.f32.mrf.mxu0
    %v1081 = vadd.f32 0.0, %v1080
    %v1082 = vpop.f32.mrf.mxu0
    %1083 = vdwg.mxu0
    %v1084 = vmul.f32 %v1081, 0.35355338
    %v1085 = vsel %vm160, %v1084, -inf
    %1086 = vmax.xlane.f32.xlu0 %v1085
    %v1087 = vpop.xlane.xlu0 %1086
    %v1088 = vsub.f32 %v1084, %v1087
    %v1089 = vmul.f32 %v1088, 1.442695
    %v1090 = vpow.pop %v1089
    %v1091 = vsel %vm160, %v1090, 0.0
    %1092 = vadd.xlane.f32.xlu0 %v1091
    %v1093 = vpop.xlane.xlu0 %1092
    %v1094 = vrcp.pop %v1093
    %v1095 = vmul.f32 %v1090, %v1094
    %1096 = vrot.lane.b32.xlu0 %v154, 56
    %v1097 = vpop.permute.xlu0 %1096
    %v1100 = vsel %vm160, %v1095, 0
    %1102 = vmatprep.subr.mxu0 0.0
    %1103 = vmatpush1.msra.mxu0 0.0
    %1104 = vmatprep.subr.mxu0 0.0
    %1105 = vmatpush1.msra.mxu0 0.0
    %1106 = vmatprep.subr.mxu0 0.0
    %1107 = vmatpush1.msra.mxu0 0.0
    %1108 = vmatprep.subr.mxu0 0.0
    %1109 = vmatpush1.msra.mxu0 0.0
    %1110 = vmatprep.subr.mxu0 0.0
    %1111 = vmatpush1.msra.mxu0 0.0
    %1112 = vmatprep.subr.mxu0 0.0
    %1113 = vmatpush1.msra.mxu0 0.0
    %1114 = vmatprep.subr.mxu0 0.0
    %1115 = vmatpush1.msra.mxu0 0.0
    %1116 = vmatprep.subr.mxu0 0.0
    %1117 = vmatpush1.msra.mxu0 0.0
    %1118 = vmatprep.subr.mxu0 0.0
    %1119 = vmatpush1.msra.mxu0 0.0
    %1120 = vmatprep.subr.mxu0 0.0
    %1121 = vmatpush1.msra.mxu0 0.0
    %1122 = vmatprep.subr.mxu0 0.0
    %1123 = vmatpush1.msra.mxu0 0.0
    %1124 = vmatprep.subr.mxu0 0.0
    %1125 = vmatpush1.msra.mxu0 0.0
    %1126 = vmatprep.subr.mxu0 0.0
    %1127 = vmatpush1.msra.mxu0 0.0
    %1128 = vmatprep.subr.mxu0 0.0
    %1129 = vmatpush1.msra.mxu0 0.0
    %1130 = vmatprep.subr.mxu0 0.0
    %1131 = vmatpush1.msra.mxu0 0.0
    %1132 = vmatprep.subr.mxu0 0.0
    %1133 = vmatpush1.msra.mxu0 %v1097
    %1134 = vmatprep.subr.mxu0 0.0
    %1135 = vmatpush2.msra.mxu0 0.0
    %1136 = vmatprep.subr.mxu0 0.0
    %1137 = vmatpush2.msra.mxu0 0.0
    %1138 = vmatprep.subr.mxu0 0.0
    %1139 = vmatpush2.msra.mxu0 0.0
    %1140 = vmatprep.subr.mxu0 0.0
    %1141 = vmatpush2.msra.mxu0 0.0
    %1142 = vmatprep.subr.mxu0 0.0
    %1143 = vmatpush2.msra.mxu0 0.0
    %1144 = vmatprep.subr.mxu0 0.0
    %1145 = vmatpush2.msra.mxu0 0.0
    %1146 = vmatprep.subr.mxu0 0.0
    %1147 = vmatpush2.msra.mxu0 0.0
    %1148 = vmatprep.subr.mxu0 0.0
    %1149 = vmatpush2.msra.mxu0 0.0
    %1150 = vmatprep.subr.mxu0 0.0
    %1151 = vmatpush2.msra.mxu0 0.0
    %1152 = vmatprep.subr.mxu0 0.0
    %1153 = vmatpush2.msra.mxu0 0.0
    %1154 = vmatprep.subr.mxu0 0.0
    %1155 = vmatpush2.msra.mxu0 0.0
    %1156 = vmatprep.subr.mxu0 0.0
    %1157 = vmatpush2.msra.mxu0 0.0
    %1158 = vmatprep.subr.mxu0 0.0
    %1159 = vmatpush2.msra.mxu0 0.0
    %1160 = vmatprep.subr.mxu0 0.0
    %1161 = vmatpush2.msra.mxu0 0.0
    %1162 = vmatprep.subr.mxu0 0.0
    %1163 = vmatpush2.msra.mxu0 0.0
    %1164 = vmatprep.subr.mxu0 0.0
    %1165 = vmatpush2.msra.mxu0 0.0
    %1166 = vmatprep.mubr.f32.mxu0 0.0
    %1167 = vmatmul.mubr.f32.gmra.mxu0 %v1100
    %v1168 = vpop.f32.mrf.mxu0
    %v1169 = vadd.f32 0.0, %v1168
    %v1170 = vpop.f32.mrf.mxu0
    %1171 = vdwg.mxu0
    %1173 = vrot.lane.b32.xlu0 %v1169, 8
    %v1174 = vpop.permute.xlu0 %1173
    %1176 = vst.msk [vmem:[#allocation2 + $0x8] sm:$0xff] %vm494, %v1174
    %1177 = vrot.lane.b32.xlu0 %v154, 112
    %v1178 = vpop.permute.xlu0 %1177
    %1179 = vrot.lane.b32.xlu0 %v154, 80
    %v1180 = vpop.permute.xlu0 %1179
    %v1181 = vsel %vm160, %v1178, 0
    %v1183 = vsel %vm160, %v1180, 0
    %1185 = vmatprep.subr.mxu0 0.0
    %1186 = vmatpush1.xpose.msra.mxu0 0.0
    %1187 = vmatprep.subr.mxu0 0.0
    %1188 = vmatpush1.xpose.msra.mxu0 0.0
    %1189 = vmatprep.subr.mxu0 0.0
    %1190 = vmatpush1.xpose.msra.mxu0 0.0
    %1191 = vmatprep.subr.mxu0 0.0
    %1192 = vmatpush1.xpose.msra.mxu0 0.0
    %1193 = vmatprep.subr.mxu0 0.0
    %1194 = vmatpush1.xpose.msra.mxu0 0.0
    %1195 = vmatprep.subr.mxu0 0.0
    %1196 = vmatpush1.xpose.msra.mxu0 0.0
    %1197 = vmatprep.subr.mxu0 0.0
    %1198 = vmatpush1.xpose.msra.mxu0 0.0
    %1199 = vmatprep.subr.mxu0 0.0
    %1200 = vmatpush1.xpose.msra.mxu0 0.0
    %1201 = vmatprep.subr.mxu0 0.0
    %1202 = vmatpush1.xpose.msra.mxu0 0.0
    %1203 = vmatprep.subr.mxu0 0.0
    %1204 = vmatpush1.xpose.msra.mxu0 0.0
    %1205 = vmatprep.subr.mxu0 0.0
    %1206 = vmatpush1.xpose.msra.mxu0 0.0
    %1207 = vmatprep.subr.mxu0 0.0
    %1208 = vmatpush1.xpose.msra.mxu0 0.0
    %1209 = vmatprep.subr.mxu0 0.0
    %1210 = vmatpush1.xpose.msra.mxu0 0.0
    %1211 = vmatprep.subr.mxu0 0.0
    %1212 = vmatpush1.xpose.msra.mxu0 0.0
    %1213 = vmatprep.subr.mxu0 0.0
    %1214 = vmatpush1.xpose.msra.mxu0 0.0
    %1215 = vmatprep.subr.mxu0 0.0
    %1216 = vmatpush1.xpose.msra.mxu0 %v1183
    %1217 = vmatprep.subr.mxu0 0.0
    %1218 = vmatpush2.xpose.msra.mxu0 0.0
    %1219 = vmatprep.subr.mxu0 0.0
    %1220 = vmatpush2.xpose.msra.mxu0 0.0
    %1221 = vmatprep.subr.mxu0 0.0
    %1222 = vmatpush2.xpose.msra.mxu0 0.0
    %1223 = vmatprep.subr.mxu0 0.0
    %1224 = vmatpush2.xpose.msra.mxu0 0.0
    %1225 = vmatprep.subr.mxu0 0.0
    %1226 = vmatpush2.xpose.msra.mxu0 0.0
    %1227 = vmatprep.subr.mxu0 0.0
    %1228 = vmatpush2.xpose.msra.mxu0 0.0
    %1229 = vmatprep.subr.mxu0 0.0
    %1230 = vmatpush2.xpose.msra.mxu0 0.0
    %1231 = vmatprep.subr.mxu0 0.0
    %1232 = vmatpush2.xpose.msra.mxu0 0.0
    %1233 = vmatprep.subr.mxu0 0.0
    %1234 = vmatpush2.xpose.msra.mxu0 0.0
    %1235 = vmatprep.subr.mxu0 0.0
    %1236 = vmatpush2.xpose.msra.mxu0 0.0
    %1237 = vmatprep.subr.mxu0 0.0
    %1238 = vmatpush2.xpose.msra.mxu0 0.0
    %1239 = vmatprep.subr.mxu0 0.0
    %1240 = vmatpush2.xpose.msra.mxu0 0.0
    %1241 = vmatprep.subr.mxu0 0.0
    %1242 = vmatpush2.xpose.msra.mxu0 0.0
    %1243 = vmatprep.subr.mxu0 0.0
    %1244 = vmatpush2.xpose.msra.mxu0 0.0
    %1245 = vmatprep.subr.mxu0 0.0
    %1246 = vmatpush2.xpose.msra.mxu0 0.0
    %1247 = vmatprep.subr.mxu0 0.0
    %1248 = vmatpush2.xpose.msra.mxu0 0.0
    %1249 = vmatprep.mubr.f32.mxu0 0.0
    %1250 = vmatmul.mubr.f32.gmra.mxu0 %v1181
    %v1251 = vpop.f32.mrf.mxu0
    %v1252 = vadd.f32 0.0, %v1251
    %v1253 = vpop.f32.mrf.mxu0
    %1254 = vdwg.mxu0
    %v1255 = vmul.f32 %v1252, 0.35355338
    %v1256 = vsel %vm160, %v1255, -inf
    %1257 = vmax.xlane.f32.xlu0 %v1256
    %v1258 = vpop.xlane.xlu0 %1257
    %v1259 = vsub.f32 %v1255, %v1258
    %v1260 = vmul.f32 %v1259, 1.442695
    %v1261 = vpow.pop %v1260
    %v1262 = vsel %vm160, %v1261, 0.0
    %1263 = vadd.xlane.f32.xlu0 %v1262
    %v1264 = vpop.xlane.xlu0 %1263
    %v1265 = vrcp.pop %v1264
    %v1266 = vmul.f32 %v1261, %v1265
    %1267 = vrot.lane.b32.xlu0 %v154, 48
    %v1268 = vpop.permute.xlu0 %1267
    %v1271 = vsel %vm160, %v1266, 0
    %1273 = vmatprep.subr.mxu0 0.0
    %1274 = vmatpush1.msra.mxu0 0.0
    %1275 = vmatprep.subr.mxu0 0.0
    %1276 = vmatpush1.msra.mxu0 0.0
    %1277 = vmatprep.subr.mxu0 0.0
    %1278 = vmatpush1.msra.mxu0 0.0
    %1279 = vmatprep.subr.mxu0 0.0
    %1280 = vmatpush1.msra.mxu0 0.0
    %1281 = vmatprep.subr.mxu0 0.0
    %1282 = vmatpush1.msra.mxu0 0.0
    %1283 = vmatprep.subr.mxu0 0.0
    %1284 = vmatpush1.msra.mxu0 0.0
    %1285 = vmatprep.subr.mxu0 0.0
    %1286 = vmatpush1.msra.mxu0 0.0
    %1287 = vmatprep.subr.mxu0 0.0
    %1288 = vmatpush1.msra.mxu0 0.0
    %1289 = vmatprep.subr.mxu0 0.0
    %1290 = vmatpush1.msra.mxu0 0.0
    %1291 = vmatprep.subr.mxu0 0.0
    %1292 = vmatpush1.msra.mxu0 0.0
    %1293 = vmatprep.subr.mxu0 0.0
    %1294 = vmatpush1.msra.mxu0 0.0
    %1295 = vmatprep.subr.mxu0 0.0
    %1296 = vmatpush1.msra.mxu0 0.0
    %1297 = vmatprep.subr.mxu0 0.0
    %1298 = vmatpush1.msra.mxu0 0.0
    %1299 = vmatprep.subr.mxu0 0.0
    %1300 = vmatpush1.msra.mxu0 0.0
    %1301 = vmatprep.subr.mxu0 0.0
    %1302 = vmatpush1.msra.mxu0 0.0
    %1303 = vmatprep.subr.mxu0 0.0
    %1304 = vmatpush1.msra.mxu0 %v1268
    %1305 = vmatprep.subr.mxu0 0.0
    %1306 = vmatpush2.msra.mxu0 0.0
    %1307 = vmatprep.subr.mxu0 0.0
    %1308 = vmatpush2.msra.mxu0 0.0
    %1309 = vmatprep.subr.mxu0 0.0
    %1310 = vmatpush2.msra.mxu0 0.0
    %1311 = vmatprep.subr.mxu0 0.0
    %1312 = vmatpush2.msra.mxu0 0.0
    %1313 = vmatprep.subr.mxu0 0.0
    %1314 = vmatpush2.msra.mxu0 0.0
    %1315 = vmatprep.subr.mxu0 0.0
    %1316 = vmatpush2.msra.mxu0 0.0
    %1317 = vmatprep.subr.mxu0 0.0
    %1318 = vmatpush2.msra.mxu0 0.0
    %1319 = vmatprep.subr.mxu0 0.0
    %1320 = vmatpush2.msra.mxu0 0.0
    %1321 = vmatprep.subr.mxu0 0.0
    %1322 = vmatpush2.msra.mxu0 0.0
    %1323 = vmatprep.subr.mxu0 0.0
    %1324 = vmatpush2.msra.mxu0 0.0
    %1325 = vmatprep.subr.mxu0 0.0
    %1326 = vmatpush2.msra.mxu0 0.0
    %1327 = vmatprep.subr.mxu0 0.0
    %1328 = vmatpush2.msra.mxu0 0.0
    %1329 = vmatprep.subr.mxu0 0.0
    %1330 = vmatpush2.msra.mxu0 0.0
    %1331 = vmatprep.subr.mxu0 0.0
    %1332 = vmatpush2.msra.mxu0 0.0
    %1333 = vmatprep.subr.mxu0 0.0
    %1334 = vmatpush2.msra.mxu0 0.0
    %1335 = vmatprep.subr.mxu0 0.0
    %1336 = vmatpush2.msra.mxu0 0.0
    %1337 = vmatprep.mubr.f32.mxu0 0.0
    %1338 = vmatmul.mubr.f32.gmra.mxu0 %v1271
    %v1339 = vpop.f32.mrf.mxu0
    %v1340 = vadd.f32 0.0, %v1339
    %v1341 = vpop.f32.mrf.mxu0
    %1342 = vdwg.mxu0
    %1344 = vrot.lane.b32.xlu0 %v1340, 16
    %v1345 = vpop.permute.xlu0 %1344
    %1347 = vst.msk [vmem:[#allocation2 + $0x8] sm:$0xff] %vm666, %v1345
    %1348 = vrot.lane.b32.xlu0 %v154, 104
    %v1349 = vpop.permute.xlu0 %1348
    %1350 = vrot.lane.b32.xlu0 %v154, 72
    %v1351 = vpop.permute.xlu0 %1350
    %v1352 = vsel %vm160, %v1349, 0
    %v1354 = vsel %vm160, %v1351, 0
    %1356 = vmatprep.subr.mxu0 0.0
    %1357 = vmatpush1.xpose.msra.mxu0 0.0
    %1358 = vmatprep.subr.mxu0 0.0
    %1359 = vmatpush1.xpose.msra.mxu0 0.0
    %1360 = vmatprep.subr.mxu0 0.0
    %1361 = vmatpush1.xpose.msra.mxu0 0.0
    %1362 = vmatprep.subr.mxu0 0.0
    %1363 = vmatpush1.xpose.msra.mxu0 0.0
    %1364 = vmatprep.subr.mxu0 0.0
    %1365 = vmatpush1.xpose.msra.mxu0 0.0
    %1366 = vmatprep.subr.mxu0 0.0
    %1367 = vmatpush1.xpose.msra.mxu0 0.0
    %1368 = vmatprep.subr.mxu0 0.0
    %1369 = vmatpush1.xpose.msra.mxu0 0.0
    %1370 = vmatprep.subr.mxu0 0.0
    %1371 = vmatpush1.xpose.msra.mxu0 0.0
    %1372 = vmatprep.subr.mxu0 0.0
    %1373 = vmatpush1.xpose.msra.mxu0 0.0
    %1374 = vmatprep.subr.mxu0 0.0
    %1375 = vmatpush1.xpose.msra.mxu0 0.0
    %1376 = vmatprep.subr.mxu0 0.0
    %1377 = vmatpush1.xpose.msra.mxu0 0.0
    %1378 = vmatprep.subr.mxu0 0.0
    %1379 = vmatpush1.xpose.msra.mxu0 0.0
    %1380 = vmatprep.subr.mxu0 0.0
    %1381 = vmatpush1.xpose.msra.mxu0 0.0
    %1382 = vmatprep.subr.mxu0 0.0
    %1383 = vmatpush1.xpose.msra.mxu0 0.0
    %1384 = vmatprep.subr.mxu0 0.0
    %1385 = vmatpush1.xpose.msra.mxu0 0.0
    %1386 = vmatprep.subr.mxu0 0.0
    %1387 = vmatpush1.xpose.msra.mxu0 %v1354
    %1388 = vmatprep.subr.mxu0 0.0
    %1389 = vmatpush2.xpose.msra.mxu0 0.0
    %1390 = vmatprep.subr.mxu0 0.0
    %1391 = vmatpush2.xpose.msra.mxu0 0.0
    %1392 = vmatprep.subr.mxu0 0.0
    %1393 = vmatpush2.xpose.msra.mxu0 0.0
    %1394 = vmatprep.subr.mxu0 0.0
    %1395 = vmatpush2.xpose.msra.mxu0 0.0
    %1396 = vmatprep.subr.mxu0 0.0
    %1397 = vmatpush2.xpose.msra.mxu0 0.0
    %1398 = vmatprep.subr.mxu0 0.0
    %1399 = vmatpush2.xpose.msra.mxu0 0.0
    %1400 = vmatprep.subr.mxu0 0.0
    %1401 = vmatpush2.xpose.msra.mxu0 0.0
    %1402 = vmatprep.subr.mxu0 0.0
    %1403 = vmatpush2.xpose.msra.mxu0 0.0
    %1404 = vmatprep.subr.mxu0 0.0
    %1405 = vmatpush2.xpose.msra.mxu0 0.0
    %1406 = vmatprep.subr.mxu0 0.0
    %1407 = vmatpush2.xpose.msra.mxu0 0.0
    %1408 = vmatprep.subr.mxu0 0.0
    %1409 = vmatpush2.xpose.msra.mxu0 0.0
    %1410 = vmatprep.subr.mxu0 0.0
    %1411 = vmatpush2.xpose.msra.mxu0 0.0
    %1412 = vmatprep.subr.mxu0 0.0
    %1413 = vmatpush2.xpose.msra.mxu0 0.0
    %1414 = vmatprep.subr.mxu0 0.0
    %1415 = vmatpush2.xpose.msra.mxu0 0.0
    %1416 = vmatprep.subr.mxu0 0.0
    %1417 = vmatpush2.xpose.msra.mxu0 0.0
    %1418 = vmatprep.subr.mxu0 0.0
    %1419 = vmatpush2.xpose.msra.mxu0 0.0
    %1420 = vmatprep.mubr.f32.mxu0 0.0
    %1421 = vmatmul.mubr.f32.gmra.mxu0 %v1352
    %v1422 = vpop.f32.mrf.mxu0
    %v1423 = vadd.f32 0.0, %v1422
    %v1424 = vpop.f32.mrf.mxu0
    %1425 = vdwg.mxu0
    %v1426 = vmul.f32 %v1423, 0.35355338
    %v1427 = vsel %vm160, %v1426, -inf
    %1428 = vmax.xlane.f32.xlu0 %v1427
    %v1429 = vpop.xlane.xlu0 %1428
    %v1430 = vsub.f32 %v1426, %v1429
    %v1431 = vmul.f32 %v1430, 1.442695
    %v1432 = vpow.pop %v1431
    %v1433 = vsel %vm160, %v1432, 0.0
    %1434 = vadd.xlane.f32.xlu0 %v1433
    %v1435 = vpop.xlane.xlu0 %1434
    %v1436 = vrcp.pop %v1435
    %v1437 = vmul.f32 %v1432, %v1436
    %1438 = vrot.lane.b32.xlu0 %v154, 40
    %v1439 = vpop.permute.xlu0 %1438
    %v1442 = vsel %vm160, %v1437, 0
    %1444 = vmatprep.subr.mxu0 0.0
    %1445 = vmatpush1.msra.mxu0 0.0
    %1446 = vmatprep.subr.mxu0 0.0
    %1447 = vmatpush1.msra.mxu0 0.0
    %1448 = vmatprep.subr.mxu0 0.0
    %1449 = vmatpush1.msra.mxu0 0.0
    %1450 = vmatprep.subr.mxu0 0.0
    %1451 = vmatpush1.msra.mxu0 0.0
    %1452 = vmatprep.subr.mxu0 0.0
    %1453 = vmatpush1.msra.mxu0 0.0
    %1454 = vmatprep.subr.mxu0 0.0
    %1455 = vmatpush1.msra.mxu0 0.0
    %1456 = vmatprep.subr.mxu0 0.0
    %1457 = vmatpush1.msra.mxu0 0.0
    %1458 = vmatprep.subr.mxu0 0.0
    %1459 = vmatpush1.msra.mxu0 0.0
    %1460 = vmatprep.subr.mxu0 0.0
    %1461 = vmatpush1.msra.mxu0 0.0
    %1462 = vmatprep.subr.mxu0 0.0
    %1463 = vmatpush1.msra.mxu0 0.0
    %1464 = vmatprep.subr.mxu0 0.0
    %1465 = vmatpush1.msra.mxu0 0.0
    %1466 = vmatprep.subr.mxu0 0.0
    %1467 = vmatpush1.msra.mxu0 0.0
    %1468 = vmatprep.subr.mxu0 0.0
    %1469 = vmatpush1.msra.mxu0 0.0
    %1470 = vmatprep.subr.mxu0 0.0
    %1471 = vmatpush1.msra.mxu0 0.0
    %1472 = vmatprep.subr.mxu0 0.0
    %1473 = vmatpush1.msra.mxu0 0.0
    %1474 = vmatprep.subr.mxu0 0.0
    %1475 = vmatpush1.msra.mxu0 %v1439
    %1476 = vmatprep.subr.mxu0 0.0
    %1477 = vmatpush2.msra.mxu0 0.0
    %1478 = vmatprep.subr.mxu0 0.0
    %1479 = vmatpush2.msra.mxu0 0.0
    %1480 = vmatprep.subr.mxu0 0.0
    %1481 = vmatpush2.msra.mxu0 0.0
    %1482 = vmatprep.subr.mxu0 0.0
    %1483 = vmatpush2.msra.mxu0 0.0
    %1484 = vmatprep.subr.mxu0 0.0
    %1485 = vmatpush2.msra.mxu0 0.0
    %1486 = vmatprep.subr.mxu0 0.0
    %1487 = vmatpush2.msra.mxu0 0.0
    %1488 = vmatprep.subr.mxu0 0.0
    %1489 = vmatpush2.msra.mxu0 0.0
    %1490 = vmatprep.subr.mxu0 0.0
    %1491 = vmatpush2.msra.mxu0 0.0
    %1492 = vmatprep.subr.mxu0 0.0
    %1493 = vmatpush2.msra.mxu0 0.0
    %1494 = vmatprep.subr.mxu0 0.0
    %1495 = vmatpush2.msra.mxu0 0.0
    %1496 = vmatprep.subr.mxu0 0.0
    %1497 = vmatpush2.msra.mxu0 0.0
    %1498 = vmatprep.subr.mxu0 0.0
    %1499 = vmatpush2.msra.mxu0 0.0
    %1500 = vmatprep.subr.mxu0 0.0
    %1501 = vmatpush2.msra.mxu0 0.0
    %1502 = vmatprep.subr.mxu0 0.0
    %1503 = vmatpush2.msra.mxu0 0.0
    %1504 = vmatprep.subr.mxu0 0.0
    %1505 = vmatpush2.msra.mxu0 0.0
    %1506 = vmatprep.subr.mxu0 0.0
    %1507 = vmatpush2.msra.mxu0 0.0
    %1508 = vmatprep.mubr.f32.mxu0 0.0
    %1509 = vmatmul.mubr.f32.gmra.mxu0 %v1442
    %v1510 = vpop.f32.mrf.mxu0
    %v1511 = vadd.f32 0.0, %v1510
    %v1512 = vpop.f32.mrf.mxu0
    %1513 = vdwg.mxu0
    %1515 = vrot.lane.b32.xlu0 %v1511, 24
    %v1516 = vpop.permute.xlu0 %1515
    %1518 = vst.msk [vmem:[#allocation2 + $0x8] sm:$0xff] %vm838, %v1516
    %v1519 = vld [vmem:[#allocation2] sm:$0xff]
    %v1520 = vld [vmem:[#allocation2 + $0x8] sm:$0xff]
    %v1521 = vld [vmem:[#allocation8] sm:$0xff]
    %v1522 = vld [vmem:[#allocation8 + $0x8] sm:$0xff]
    %v1523 = vld [vmem:[#allocation8 + $0x10] sm:$0xff]
    %v1524 = vld [vmem:[#allocation8 + $0x18] sm:$0xff]
    %v1525 = vld [vmem:[%s4] sm:$0x1]
    %v1527 = vlaneseq
    %v1528 = vshrl.u32 %v1527, 7
    %v1529 = vsub.s32 0, %v1528
    %v1530 = vrot.slane %v1525, %v1529
    %v1533 = vsel %vm75, %v1519, 0
    %v1536 = vsel %vm75, %v1520, 0
    %1538 = vmatprep.subr.mxu0 0.0
    %1539 = vmatpush1.msra.mxu0 0.0
    %1540 = vmatprep.subr.mxu0 0.0
    %1541 = vmatpush1.msra.mxu0 0.0
    %1542 = vmatprep.subr.mxu0 0.0
    %1543 = vmatpush1.msra.mxu0 0.0
    %1544 = vmatprep.subr.mxu0 0.0
    %1545 = vmatpush1.msra.mxu0 0.0
    %1546 = vmatprep.subr.mxu0 0.0
    %1547 = vmatpush1.msra.mxu0 0.0
    %1548 = vmatprep.subr.mxu0 0.0
    %1549 = vmatpush1.msra.mxu0 0.0
    %1550 = vmatprep.subr.mxu0 0.0
    %1551 = vmatpush1.msra.mxu0 0.0
    %1552 = vmatprep.subr.mxu0 0.0
    %1553 = vmatpush1.msra.mxu0 0.0
    %1554 = vmatprep.subr.mxu0 0.0
    %1555 = vmatpush1.msra.mxu0 0.0
    %1556 = vmatprep.subr.mxu0 0.0
    %1557 = vmatpush1.msra.mxu0 0.0
    %1558 = vmatprep.subr.mxu0 0.0
    %1559 = vmatpush1.msra.mxu0 0.0
    %1560 = vmatprep.subr.mxu0 0.0
    %1561 = vmatpush1.msra.mxu0 0.0
    %1562 = vmatprep.subr.mxu0 0.0
    %1563 = vmatpush1.msra.mxu0 %v1524
    %1564 = vmatprep.subr.mxu0 0.0
    %1565 = vmatpush1.msra.mxu0 %v1523
    %1566 = vmatprep.subr.mxu0 0.0
    %1567 = vmatpush1.msra.mxu0 %v1522
    %1568 = vmatprep.subr.mxu0 0.0
    %1569 = vmatpush1.msra.mxu0 %v1521
    %1570 = vmatprep.subr.mxu0 0.0
    %1571 = vmatpush2.msra.mxu0 0.0
    %1572 = vmatprep.subr.mxu0 0.0
    %1573 = vmatpush2.msra.mxu0 0.0
    %1574 = vmatprep.subr.mxu0 0.0
    %1575 = vmatpush2.msra.mxu0 0.0
    %1576 = vmatprep.subr.mxu0 0.0
    %1577 = vmatpush2.msra.mxu0 0.0
    %1578 = vmatprep.subr.mxu0 0.0
    %1579 = vmatpush2.msra.mxu0 0.0
    %1580 = vmatprep.subr.mxu0 0.0
    %1581 = vmatpush2.msra.mxu0 0.0
    %1582 = vmatprep.subr.mxu0 0.0
    %1583 = vmatpush2.msra.mxu0 0.0
    %1584 = vmatprep.subr.mxu0 0.0
    %1585 = vmatpush2.msra.mxu0 0.0
    %1586 = vmatprep.subr.mxu0 0.0
    %1587 = vmatpush2.msra.mxu0 0.0
    %1588 = vmatprep.subr.mxu0 0.0
    %1589 = vmatpush2.msra.mxu0 0.0
    %1590 = vmatprep.subr.mxu0 0.0
    %1591 = vmatpush2.msra.mxu0 0.0
    %1592 = vmatprep.subr.mxu0 0.0
    %1593 = vmatpush2.msra.mxu0 0.0
    %1594 = vmatprep.subr.mxu0 0.0
    %1595 = vmatpush2.msra.mxu0 0.0
    %1596 = vmatprep.subr.mxu0 0.0
    %1597 = vmatpush2.msra.mxu0 0.0
    %1598 = vmatprep.subr.mxu0 0.0
    %1599 = vmatpush2.msra.mxu0 0.0
    %1600 = vmatprep.subr.mxu0 0.0
    %1601 = vmatpush2.msra.mxu0 0.0
    %1602 = vmatprep.mubr.f32.mxu0 0.0
    %1603 = vmatmul.mubr.f32.gmra.mxu0 %v1533
    %v1604 = vpop.f32.mrf.mxu0
    %v1605 = vadd.f32 %v1530, %v1604
    %v1606 = vpop.f32.mrf.mxu0
    %1607 = vmatprep.mubr.f32.mxu0 0.0
    %1608 = vmatmul.mubr.f32.gmra.mxu0 %v1536
    %v1609 = vpop.f32.mrf.mxu0
    %v1610 = vadd.f32 %v1530, %v1609
    %v1611 = vpop.f32.mrf.mxu0
    %1612 = vdwg.mxu0
    %1613 = vst.msk [vmem:[#allocation9] sm:$0xff] %vm75, %v1605
    %1614 = vst.msk [vmem:[#allocation9 + $0x8] sm:$0xff] %vm75, %v1610
    // Predicated region
    $region34: #{tpu_custom_call.1} parent=1 // pred_check
      _
    $region35: #{tpu_custom_call.1} parent=1 // pred_check_branch
      %1616 = sbr.rel (0) target = $region37
    $region36: #{tpu_custom_call.1} parent=1 // pred_region
      %s1618 = ssub.s32 256, 256
      %1619 = vsyncadd [#allocation5], %s1618
      %s1620 = sshll.u32 [#allocation9], 4
      %s1621 = int_to_ptr.vmem [resolvable:$true] %s1620
      %1626 = dma.vmem_to_hbm [thread:$0]  %s1621, 256, %s5, [#allocation5], 128, 128, 8
    $region37: #{tpu_custom_call.1} parent=1 // pred_fallthru
      _
    // Predicated region
    $region38: #{tpu_custom_call.1} parent=1 // pred_check
      _
    $region39: #{tpu_custom_call.1} parent=1 // pred_check_branch
      %1628 = sbr.rel (0) target = $region41
    $region40: #{tpu_custom_call.1} parent=1 // pred_region
      %1629 = dma.done [#allocation5], 256
    $region41: #{tpu_custom_call.1} parent=1 // pred_fallthru
      _
    %1630 = vsyncpa [#allocation4], 1
    %1631 = vsyncpa [#allocation7], 1
    %1632 = vsyncpa [#allocation5], 1

</llo_original>
